<compile_context>
chip_gen: v6e
topology: v6e:2x2x1
jax: 0.10.0
libtpu: 0.0.40
codegen_flags: <defaults>
</compile_context>

<pallas_src>
import functools
import math

import jax
import jax.numpy as jnp
from jax import lax
from jax.experimental import pallas as pl
from jax.experimental.pallas import tpu as pltpu


# ---------------------------------------------------------------------------
# Fused Pallas kernel: all TransformerConv layers + mean-pool + Linear head
# ---------------------------------------------------------------------------
def _fused_graph_transformer_kernel(*refs, num_layers, heads, head_dim):
    """refs layout:
         [x, adj, member, inv_count, wp, bp,
          (w_all, b_all, gamma, beta) x (num_layers - 1),
          (w_all, b_all),                 # last layer: no LayerNorm params
          out]
    """
    x_ref, adj_ref, member_ref, invcnt_ref, wp_ref, bp_ref = refs[:6]
    layer_refs = refs[6:-1]
    out_ref = refs[-1]

    hd = heads * head_dim
    scale = 1.0 / math.sqrt(head_dim)
    inv_heads = 1.0 / float(heads)

    # adj arrives as bf16 edge counts (exact for small ints); widen once.
    adj = adj_ref[...].astype(jnp.float32)                    # [N, N] (dst, src)
    # Hoisted once for all layers/heads: additive mask bias + "has incoming edge".
    bias_mask = jnp.where(adj > 0.0, 0.0, -1e30)              # [N, N]
    has_nbr = jnp.sum(adj, axis=-1, keepdims=True) > 0.0      # [N, 1]

    h = x_ref[...].astype(jnp.float32)                        # [N, Din]

    ridx = 0
    for layer in range(num_layers):
        is_last = layer == num_layers - 1
        w_all = layer_refs[ridx][...]                          # bf16 [Din, 3*hd + D]
        b_all = layer_refs[ridx + 1][...]                      # f32  [1, 3*hd + D]
        if is_last:
            gamma = beta = None
            ridx += 2
        else:
            gamma = layer_refs[ridx + 2][...]                  # f32 [1, D]
            beta = layer_refs[ridx + 3][...]                   # f32 [1, D]
            ridx += 4

        # One fused Q|K|V|skip projection: single wide bf16 MXU matmul.
        proj = jnp.dot(h.astype(jnp.bfloat16), w_all,
                       preferred_element_type=jnp.float32) + b_all
        q = proj[:, 0 * hd:1 * hd]
        k = proj[:, 1 * hd:2 * hd]
        v = proj[:, 2 * hd:3 * hd]
        skip = proj[:, 3 * hd:3 * hd + head_dim]

        acc = jnp.zeros((q.shape[0], head_dim), jnp.float32)
        for hh in range(heads):                                # heads small: static unroll
            sl = slice(hh * head_dim, (hh + 1) * head_dim)
            qh = (q[:, sl] * scale).astype(jnp.bfloat16)       # fold 1/sqrt(D) into q
            kh = k[:, sl].astype(jnp.bfloat16)
            vh = v[:, sl].astype(jnp.bfloat16)
            # q . k^T via dot_general contracting dims -> no explicit transpose.
            scores = lax.dot_general(
                qh, kh, dimension_numbers=(((1,), (1,)), ((), ())),
                preferred_element_type=jnp.float32) + bias_mask
            m = jnp.where(has_nbr, jnp.max(scores, axis=-1, keepdims=True), 0.0)
            p = adj * jnp.exp(scores - m)                      # weight by edge multiplicity
            denom = jnp.maximum(jnp.sum(p, axis=-1, keepdims=True), 1e-30)
            alpha = p * pl.reciprocal(denom, approx=True)      # EUP, not a VPU divide
            acc = acc + jnp.dot(alpha.astype(jnp.bfloat16), vh,
                                preferred_element_type=jnp.float32)

        out = acc * inv_heads + skip                           # concat=False -> mean of heads
        out = jnp.maximum(out, 0.0)                            # ReLU
        # TODO(synk): nn.Dropout is identity in eval mode; not emitted as a kernel op.
        if not is_last:                                        # LayerNorm on all but last
            mu = jnp.mean(out, axis=-1, keepdims=True)
            var = jnp.mean((out - mu) ** 2, axis=-1, keepdims=True)
            out = (out - mu) * lax.rsqrt(var + 1e-5) * gamma + beta
        h = out

    # global_mean_pool + Linear(hidden, 1), fused so h never returns to HBM.
    pooled = jnp.dot(member_ref[...], h.astype(jnp.bfloat16),
                     preferred_element_type=jnp.float32) * invcnt_ref[...]   # [G, D]
    out_ref[...] = jnp.dot(pooled.astype(jnp.bfloat16), wp_ref[...],
                           preferred_element_type=jnp.float32) + bp_ref[...]  # [G, 1]


def _vmem_specs(n):
    return [pl.BlockSpec(memory_space=pltpu.MemorySpace.VMEM) for _ in range(n)]


# ---------------------------------------------------------------------------
# Wrapper (plain-JAX glue: dense adjacency, weight fusion, dtype prep)
# ---------------------------------------------------------------------------
def graph_transformer_forward(params, x, edge_index, batch, num_graphs,
                              *, num_layers, heads, hidden_dim):
    n = x.shape[0]
    src, dst = edge_index[0], edge_index[1]
    # Dense edge-count adjacency adj[dst, src]; shipped as bf16 (exact small ints).
    adj = jnp.zeros((n, n), jnp.float32).at[dst, src].add(1.0)
    # Graph-membership matrix and per-graph inverse node counts for mean pool.
    member = (batch[None, :] == jnp.arange(num_graphs)[:, None]).astype(jnp.float32)
    inv_count = 1.0 / jnp.maximum(member.sum(axis=1, keepdims=True), 1.0)

    args = [x.astype(jnp.bfloat16),
            adj.astype(jnp.bfloat16),
            member.astype(jnp.bfloat16),
            inv_count.astype(jnp.float32),
            params["wp"].astype(jnp.bfloat16),
            params["bp"].astype(jnp.float32)]
    for i, layer in enumerate(params["convs"]):
        w_all = jnp.concatenate([layer["wq"], layer["wk"], layer["wv"], layer["ws"]],
                                axis=1).astype(jnp.bfloat16)
        b_all = jnp.concatenate([layer["bq"], layer["bk"], layer["bv"], layer["bs"]],
                                axis=1).astype(jnp.float32)
        args += [w_all, b_all]
        if i != num_layers - 1:                 # last layer has no LayerNorm
            args += [layer["gamma"], layer["beta"]]

    kern = functools.partial(_fused_graph_transformer_kernel,
                             num_layers=num_layers, heads=heads,
                             head_dim=hidden_dim)
    return pl.pallas_call(
        kern,
        out_shape=jax.ShapeDtypeStruct((num_graphs, 1), jnp.float32),
        in_specs=_vmem_specs(len(args)),
        out_specs=pl.BlockSpec(memory_space=pltpu.MemorySpace.VMEM),
        compiler_params=pltpu.CompilerParams(vmem_limit_bytes=32 * 1024 * 1024),
    )(*args)


def init_params(key, input_dim, hidden_dim, num_layers, heads):
    params = {"convs": []}
    for i in range(num_layers):
        din = input_dim if i == 0 else hidden_dim
        key, *ks = jax.random.split(key, 9)
        layer = {
            "wq": 0.1 * jax.random.normal(ks[0], (din, heads * hidden_dim), jnp.float32),
            "bq": 0.1 * jax.random.normal(ks[1], (1, heads * hidden_dim), jnp.float32),
            "wk": 0.1 * jax.random.normal(ks[2], (din, heads * hidden_dim), jnp.float32),
            "bk": 0.1 * jax.random.normal(ks[3], (1, heads * hidden_dim), jnp.float32),
            "wv": 0.1 * jax.random.normal(ks[4], (din, heads * hidden_dim), jnp.float32),
            "bv": 0.1 * jax.random.normal(ks[5], (1, heads * hidden_dim), jnp.float32),
            "ws": 0.1 * jax.random.normal(ks[6], (din, hidden_dim), jnp.float32),
            "bs": 0.1 * jax.random.normal(ks[7], (1, hidden_dim), jnp.float32),
        }
        key, k1, k2 = jax.random.split(key, 3)
        # LayerNorm affine params (used for layers 0..num_layers-2 only).
        layer["gamma"] = 1.0 + 0.1 * jax.random.normal(k1, (1, hidden_dim), jnp.float32)
        layer["beta"] = 0.1 * jax.random.normal(k2, (1, hidden_dim), jnp.float32)
        params["convs"].append(layer)
    key, k1, k2 = jax.random.split(key, 3)
    params["wp"] = 0.1 * jax.random.normal(k1, (hidden_dim, 1), jnp.float32)
    params["bp"] = 0.1 * jax.random.normal(k2, (1, 1), jnp.float32)
    return params


# ---------------------------------------------------------------------------
# Pure-JAX reference (same math; mirrors the kernel's bf16 cast points so the
# comparison tolerance can stay tight).
# ---------------------------------------------------------------------------
def reference_forward(params, x, edge_index, batch, num_graphs,
                      *, num_layers, heads, hidden_dim):
    def bf(a):
        return a.astype(jnp.bfloat16).astype(jnp.float32)

    n = x.shape[0]
    src, dst = edge_index[0], edge_index[1]
    adj = bf(jnp.zeros((n, n), jnp.float32).at[dst, src].add(1.0))
    bias_mask = jnp.where(adj > 0, 0.0, -1e30)
    has_nbr = adj.sum(-1, keepdims=True) > 0
    scale = 1.0 / math.sqrt(hidden_dim)

    h = bf(x.astype(jnp.float32))
    for i in range(num_layers):
        p = params["convs"][i]
        hb = bf(h)
        q = hb @ bf(p["wq"]) + p["bq"]
        k = hb @ bf(p["wk"]) + p["bk"]
        v = hb @ bf(p["wv"]) + p["bv"]
        skip = hb @ bf(p["ws"]) + p["bs"]
        acc = jnp.zeros((n, hidden_dim), jnp.float32)
        for hd in range(heads):
            sl = slice(hd * hidden_dim, (hd + 1) * hidden_dim)
            s = bf(q[:, sl] * scale) @ bf(k[:, sl]).T + bias_mask
            m = jnp.where(has_nbr, jnp.max(s, -1, keepdims=True), 0.0)
            pw = adj * jnp.exp(s - m)
            alpha = pw / jnp.maximum(pw.sum(-1, keepdims=True), 1e-30)
            acc = acc + bf(alpha) @ bf(v[:, sl])
        out = jnp.maximum(acc / heads + skip, 0.0)
        if i != num_layers - 1:
            mu = out.mean(-1, keepdims=True)
            var = ((out - mu) ** 2).mean(-1, keepdims=True)
            out = (out - mu) / jnp.sqrt(var + 1e-5) * p["gamma"] + p["beta"]
        h = out
    member = (batch[None, :] == jnp.arange(num_graphs)[:, None]).astype(jnp.float32)
    pooled = (bf(member) @ bf(h)) / jnp.maximum(member.sum(1, keepdims=True), 1.0)
    return bf(pooled) @ bf(params["wp"]) + params["bp"]


if __name__ == "__main__":
    INPUT_DIM, HIDDEN_DIM, NUM_LAYERS, HEADS = 16, 32, 3, 2
    N_NODES, N_GRAPHS, EDGES_PER_GRAPH = 16, 2, 24

    key = jax.random.PRNGKey(0)
    key, kx, ke1, ke2, kp = jax.random.split(key, 5)

    x = jax.random.normal(kx, (N_NODES, INPUT_DIM), jnp.float32)
    # Two graphs of 8 nodes each; edges stay inside their own graph.
    half = N_NODES // N_GRAPHS
    src0 = jax.random.randint(ke1, (EDGES_PER_GRAPH,), 0, half)
    dst0 = jax.random.randint(ke2, (EDGES_PER_GRAPH,), 0, half)
    src = jnp.concatenate([src0, src0 + half])
    dst = jnp.concatenate([dst0, dst0 + half])
    edge_index = jnp.stack([src, dst]).astype(jnp.int32)        # [2, 48]
    batch = jnp.concatenate([jnp.zeros((half,), jnp.int32),
                             jnp.ones((half,), jnp.int32)])      # [16]

    params = init_params(kp, INPUT_DIM, HIDDEN_DIM, NUM_LAYERS, HEADS)

    out = graph_transformer_forward(params, x, edge_index, batch, N_GRAPHS,
                                    num_layers=NUM_LAYERS, heads=HEADS,
                                    hidden_dim=HIDDEN_DIM)
    out = jax.block_until_ready(out)

    ref = reference_forward(params, x, edge_index, batch, N_GRAPHS,
                            num_layers=NUM_LAYERS, heads=HEADS,
                            hidden_dim=HIDDEN_DIM)
    assert out.shape == (N_GRAPHS, 1)
    assert bool(jnp.all(jnp.isfinite(out)))
    assert bool(jnp.allclose(out, ref, rtol=3e-2, atol=3e-2))
    print("KERNEL_OK")
</pallas_src>

<mosaic_0001>
module attributes {stable_mosaic.version = 11 : i64} {
  func.func @_fused_graph_transformer_kernel(%arg0: memref<16x16xbf16, #tpu.memory_space<vmem>>, %arg1: memref<16x16xbf16, #tpu.memory_space<vmem>>, %arg2: memref<2x16xbf16, #tpu.memory_space<vmem>>, %arg3: memref<2x1xf32, #tpu.memory_space<vmem>>, %arg4: memref<32x1xbf16, #tpu.memory_space<vmem>>, %arg5: memref<1x1xf32, #tpu.memory_space<vmem>>, %arg6: memref<16x224xbf16, #tpu.memory_space<vmem>>, %arg7: memref<1x224xf32, #tpu.memory_space<vmem>>, %arg8: memref<1x32xf32, #tpu.memory_space<vmem>>, %arg9: memref<1x32xf32, #tpu.memory_space<vmem>>, %arg10: memref<32x224xbf16, #tpu.memory_space<vmem>>, %arg11: memref<1x224xf32, #tpu.memory_space<vmem>>, %arg12: memref<1x32xf32, #tpu.memory_space<vmem>>, %arg13: memref<1x32xf32, #tpu.memory_space<vmem>>, %arg14: memref<32x224xbf16, #tpu.memory_space<vmem>>, %arg15: memref<1x224xf32, #tpu.memory_space<vmem>>, %arg16: memref<2x1xf32, #tpu.memory_space<vmem>>) attributes {dimension_semantics = [], scalar_prefetch = 0 : i64, scratch_operands = 0 : i64, tpu.core_type = #tpu.core_type<tc>} {
    %c0 = arith.constant 0 : index
    %c0_0 = arith.constant 0 : index
    %0 = vector.load %arg1[%c0, %c0_0] : memref<16x16xbf16, #tpu.memory_space<vmem>>, vector<16x16xbf16>
    %1 = arith.extf %0 : vector<16x16xbf16> to vector<16x16xf32>
    %cst = arith.constant 0.000000e+00 : f32
    %2 = vector.broadcast %cst : f32 to vector<16x16xf32>
    %3 = arith.cmpf ogt, %1, %2 : vector<16x16xf32>
    %cst_1 = arith.constant 0.000000e+00 : f32
    %cst_2 = arith.constant -1.000000e+30 : f32
    %4 = vector.broadcast %cst_1 : f32 to vector<16x16xf32>
    %5 = vector.broadcast %cst_2 : f32 to vector<16x16xf32>
    %6 = arith.select %3, %4, %5 : vector<16x16xi1>, vector<16x16xf32>
    %cst_3 = arith.constant dense<0.000000e+00> : vector<16xf32>
    %7 = vector.multi_reduction <add>, %1, %cst_3 [1] : vector<16x16xf32> to vector<16xf32>
    %8 = vector.shape_cast %7 : vector<16xf32> to vector<16x1xf32>
    %cst_4 = arith.constant 0.000000e+00 : f32
    %9 = vector.broadcast %cst_4 : f32 to vector<16x1xf32>
    %10 = arith.cmpf ogt, %8, %9 : vector<16x1xf32>
    %c0_5 = arith.constant 0 : index
    %c0_6 = arith.constant 0 : index
    %11 = vector.load %arg0[%c0_5, %c0_6] : memref<16x16xbf16, #tpu.memory_space<vmem>>, vector<16x16xbf16>
    %12 = arith.extf %11 : vector<16x16xbf16> to vector<16x16xf32>
    %c0_7 = arith.constant 0 : index
    %c0_8 = arith.constant 0 : index
    %13 = vector.load %arg6[%c0_7, %c0_8] : memref<16x224xbf16, #tpu.memory_space<vmem>>, vector<16x224xbf16>
    %c0_9 = arith.constant 0 : index
    %c0_10 = arith.constant 0 : index
    %14 = vector.load %arg7[%c0_9, %c0_10] : memref<1x224xf32, #tpu.memory_space<vmem>>, vector<1x224xf32>
    %c0_11 = arith.constant 0 : index
    %c0_12 = arith.constant 0 : index
    %15 = vector.load %arg8[%c0_11, %c0_12] : memref<1x32xf32, #tpu.memory_space<vmem>>, vector<1x32xf32>
    %c0_13 = arith.constant 0 : index
    %c0_14 = arith.constant 0 : index
    %16 = vector.load %arg9[%c0_13, %c0_14] : memref<1x32xf32, #tpu.memory_space<vmem>>, vector<1x32xf32>
    %17 = arith.truncf %12 : vector<16x16xf32> to vector<16x16xbf16>
    %cst_15 = arith.constant dense<0.000000e+00> : vector<16x224xf32>
    %18 = tpu.matmul %17, %13, %cst_15 {dimension_numbers = #tpu.dot_dimension_numbers<[1], [0], [0], [1], [0, 0, 1, 1], [], []>} : vector<16x16xbf16>, vector<16x224xbf16>, vector<16x224xf32> -> vector<16x224xf32>
    %19 = vector.broadcast %14 : vector<1x224xf32> to vector<16x224xf32>
    %20 = arith.addf %18, %19 : vector<16x224xf32>
    %21 = vector.extract_strided_slice %20 {offsets = [0, 0], sizes = [16, 64], strides = [1, 1]} : vector<16x224xf32> to vector<16x64xf32>
    %22 = vector.extract_strided_slice %20 {offsets = [0, 64], sizes = [16, 64], strides = [1, 1]} : vector<16x224xf32> to vector<16x64xf32>
    %23 = vector.extract_strided_slice %20 {offsets = [0, 128], sizes = [16, 64], strides = [1, 1]} : vector<16x224xf32> to vector<16x64xf32>
    %24 = vector.extract_strided_slice %20 {offsets = [0, 192], sizes = [16, 32], strides = [1, 1]} : vector<16x224xf32> to vector<16x32xf32>
    %cst_16 = arith.constant 0.000000e+00 : f32
    %25 = vector.broadcast %cst_16 : f32 to vector<16x32xf32>
    %26 = vector.extract_strided_slice %21 {offsets = [0, 0], sizes = [16, 32], strides = [1, 1]} : vector<16x64xf32> to vector<16x32xf32>
    %cst_17 = arith.constant 0.176776692 : f32
    %27 = vector.broadcast %cst_17 : f32 to vector<16x32xf32>
    %28 = arith.mulf %26, %27 : vector<16x32xf32>
    %29 = arith.truncf %28 : vector<16x32xf32> to vector<16x32xbf16>
    %30 = vector.extract_strided_slice %22 {offsets = [0, 0], sizes = [16, 32], strides = [1, 1]} : vector<16x64xf32> to vector<16x32xf32>
    %31 = arith.truncf %30 : vector<16x32xf32> to vector<16x32xbf16>
    %32 = vector.extract_strided_slice %23 {offsets = [0, 0], sizes = [16, 32], strides = [1, 1]} : vector<16x64xf32> to vector<16x32xf32>
    %33 = arith.truncf %32 : vector<16x32xf32> to vector<16x32xbf16>
    %cst_18 = arith.constant dense<0.000000e+00> : vector<16x16xf32>
    %34 = tpu.matmul %29, %31, %cst_18 {dimension_numbers = #tpu.dot_dimension_numbers<[1], [1], [0], [0], [0, 0, 1, 0], [], []>} : vector<16x32xbf16>, vector<16x32xbf16>, vector<16x16xf32> -> vector<16x16xf32>
    %35 = arith.addf %34, %6 : vector<16x16xf32>
    %cst_19 = arith.constant dense<0xFF800000> : vector<16xf32>
    %36 = vector.multi_reduction <maximumf>, %35, %cst_19 [1] : vector<16x16xf32> to vector<16xf32>
    %37 = vector.shape_cast %36 : vector<16xf32> to vector<16x1xf32>
    %cst_20 = arith.constant 0.000000e+00 : f32
    %38 = vector.broadcast %cst_20 : f32 to vector<16x1xf32>
    %39 = arith.select %10, %37, %38 : vector<16x1xi1>, vector<16x1xf32>
    %40 = vector.broadcast %39 : vector<16x1xf32> to vector<16x16xf32>
    %41 = arith.subf %35, %40 : vector<16x16xf32>
    %42 = math.exp %41 : vector<16x16xf32>
    %43 = arith.mulf %1, %42 : vector<16x16xf32>
    %cst_21 = arith.constant dense<0.000000e+00> : vector<16xf32>
    %44 = vector.multi_reduction <add>, %43, %cst_21 [1] : vector<16x16xf32> to vector<16xf32>
    %45 = vector.shape_cast %44 : vector<16xf32> to vector<16x1xf32>
    %cst_22 = arith.constant 1.000000e-30 : f32
    %46 = vector.broadcast %cst_22 : f32 to vector<16x1xf32>
    %47 = arith.maximumf %45, %46 : vector<16x1xf32>
    %48 = tpu.reciprocal %47 {approx = true} : vector<16x1xf32> -> vector<16x1xf32>
    %49 = vector.broadcast %48 : vector<16x1xf32> to vector<16x16xf32>
    %50 = arith.mulf %43, %49 : vector<16x16xf32>
    %51 = arith.truncf %50 : vector<16x16xf32> to vector<16x16xbf16>
    %cst_23 = arith.constant dense<0.000000e+00> : vector<16x32xf32>
    %52 = tpu.matmul %51, %33, %cst_23 {dimension_numbers = #tpu.dot_dimension_numbers<[1], [0], [0], [1], [0, 0, 1, 1], [], []>} : vector<16x16xbf16>, vector<16x32xbf16>, vector<16x32xf32> -> vector<16x32xf32>
    %53 = arith.addf %25, %52 : vector<16x32xf32>
    %54 = vector.extract_strided_slice %21 {offsets = [0, 32], sizes = [16, 32], strides = [1, 1]} : vector<16x64xf32> to vector<16x32xf32>
    %cst_24 = arith.constant 0.176776692 : f32
    %55 = vector.broadcast %cst_24 : f32 to vector<16x32xf32>
    %56 = arith.mulf %54, %55 : vector<16x32xf32>
    %57 = arith.truncf %56 : vector<16x32xf32> to vector<16x32xbf16>
    %58 = vector.extract_strided_slice %22 {offsets = [0, 32], sizes = [16, 32], strides = [1, 1]} : vector<16x64xf32> to vector<16x32xf32>
    %59 = arith.truncf %58 : vector<16x32xf32> to vector<16x32xbf16>
    %60 = vector.extract_strided_slice %23 {offsets = [0, 32], sizes = [16, 32], strides = [1, 1]} : vector<16x64xf32> to vector<16x32xf32>
    %61 = arith.truncf %60 : vector<16x32xf32> to vector<16x32xbf16>
    %cst_25 = arith.constant dense<0.000000e+00> : vector<16x16xf32>
    %62 = tpu.matmul %57, %59, %cst_25 {dimension_numbers = #tpu.dot_dimension_numbers<[1], [1], [0], [0], [0, 0, 1, 0], [], []>} : vector<16x32xbf16>, vector<16x32xbf16>, vector<16x16xf32> -> vector<16x16xf32>
    %63 = arith.addf %62, %6 : vector<16x16xf32>
    %cst_26 = arith.constant dense<0xFF800000> : vector<16xf32>
    %64 = vector.multi_reduction <maximumf>, %63, %cst_26 [1] : vector<16x16xf32> to vector<16xf32>
    %65 = vector.shape_cast %64 : vector<16xf32> to vector<16x1xf32>
    %cst_27 = arith.constant 0.000000e+00 : f32
    %66 = vector.broadcast %cst_27 : f32 to vector<16x1xf32>
    %67 = arith.select %10, %65, %66 : vector<16x1xi1>, vector<16x1xf32>
    %68 = vector.broadcast %67 : vector<16x1xf32> to vector<16x16xf32>
    %69 = arith.subf %63, %68 : vector<16x16xf32>
    %70 = math.exp %69 : vector<16x16xf32>
    %71 = arith.mulf %1, %70 : vector<16x16xf32>
    %cst_28 = arith.constant dense<0.000000e+00> : vector<16xf32>
    %72 = vector.multi_reduction <add>, %71, %cst_28 [1] : vector<16x16xf32> to vector<16xf32>
    %73 = vector.shape_cast %72 : vector<16xf32> to vector<16x1xf32>
    %cst_29 = arith.constant 1.000000e-30 : f32
    %74 = vector.broadcast %cst_29 : f32 to vector<16x1xf32>
    %75 = arith.maximumf %73, %74 : vector<16x1xf32>
    %76 = tpu.reciprocal %75 {approx = true} : vector<16x1xf32> -> vector<16x1xf32>
    %77 = vector.broadcast %76 : vector<16x1xf32> to vector<16x16xf32>
    %78 = arith.mulf %71, %77 : vector<16x16xf32>
    %79 = arith.truncf %78 : vector<16x16xf32> to vector<16x16xbf16>
    %cst_30 = arith.constant dense<0.000000e+00> : vector<16x32xf32>
    %80 = tpu.matmul %79, %61, %cst_30 {dimension_numbers = #tpu.dot_dimension_numbers<[1], [0], [0], [1], [0, 0, 1, 1], [], []>} : vector<16x16xbf16>, vector<16x32xbf16>, vector<16x32xf32> -> vector<16x32xf32>
    %81 = arith.addf %53, %80 : vector<16x32xf32>
    %cst_31 = arith.constant 5.000000e-01 : f32
    %82 = vector.broadcast %cst_31 : f32 to vector<16x32xf32>
    %83 = arith.mulf %81, %82 : vector<16x32xf32>
    %84 = arith.addf %83, %24 : vector<16x32xf32>
    %cst_32 = arith.constant 0.000000e+00 : f32
    %85 = vector.broadcast %cst_32 : f32 to vector<16x32xf32>
    %86 = arith.maximumf %84, %85 : vector<16x32xf32>
    %cst_33 = arith.constant dense<0.000000e+00> : vector<16xf32>
    %87 = vector.multi_reduction <add>, %86, %cst_33 [1] : vector<16x32xf32> to vector<16xf32>
    %88 = vector.shape_cast %87 : vector<16xf32> to vector<16x1xf32>
    %cst_34 = arith.constant 3.200000e+01 : f32
    %89 = vector.broadcast %cst_34 : f32 to vector<16x1xf32>
    %90 = arith.divf %88, %89 : vector<16x1xf32>
    %91 = vector.broadcast %90 : vector<16x1xf32> to vector<16x32xf32>
    %92 = arith.subf %86, %91 : vector<16x32xf32>
    %93 = arith.mulf %92, %92 : vector<16x32xf32>
    %cst_35 = arith.constant dense<0.000000e+00> : vector<16xf32>
    %94 = vector.multi_reduction <add>, %93, %cst_35 [1] : vector<16x32xf32> to vector<16xf32>
    %95 = vector.shape_cast %94 : vector<16xf32> to vector<16x1xf32>
    %cst_36 = arith.constant 3.200000e+01 : f32
    %96 = vector.broadcast %cst_36 : f32 to vector<16x1xf32>
    %97 = arith.divf %95, %96 : vector<16x1xf32>
    %98 = vector.broadcast %90 : vector<16x1xf32> to vector<16x32xf32>
    %99 = arith.subf %86, %98 : vector<16x32xf32>
    %cst_37 = arith.constant 9.99999974E-6 : f32
    %100 = vector.broadcast %cst_37 : f32 to vector<16x1xf32>
    %101 = arith.addf %97, %100 : vector<16x1xf32>
    %102 = math.rsqrt %101 : vector<16x1xf32>
    %103 = vector.broadcast %102 : vector<16x1xf32> to vector<16x32xf32>
    %104 = arith.mulf %99, %103 : vector<16x32xf32>
    %105 = vector.broadcast %15 : vector<1x32xf32> to vector<16x32xf32>
    %106 = arith.mulf %104, %105 : vector<16x32xf32>
    %107 = vector.broadcast %16 : vector<1x32xf32> to vector<16x32xf32>
    %108 = arith.addf %106, %107 : vector<16x32xf32>
    %c0_38 = arith.constant 0 : index
    %c0_39 = arith.constant 0 : index
    %109 = vector.load %arg10[%c0_38, %c0_39] : memref<32x224xbf16, #tpu.memory_space<vmem>>, vector<32x224xbf16>
    %c0_40 = arith.constant 0 : index
    %c0_41 = arith.constant 0 : index
    %110 = vector.load %arg11[%c0_40, %c0_41] : memref<1x224xf32, #tpu.memory_space<vmem>>, vector<1x224xf32>
    %c0_42 = arith.constant 0 : index
    %c0_43 = arith.constant 0 : index
    %111 = vector.load %arg12[%c0_42, %c0_43] : memref<1x32xf32, #tpu.memory_space<vmem>>, vector<1x32xf32>
    %c0_44 = arith.constant 0 : index
    %c0_45 = arith.constant 0 : index
    %112 = vector.load %arg13[%c0_44, %c0_45] : memref<1x32xf32, #tpu.memory_space<vmem>>, vector<1x32xf32>
    %113 = arith.truncf %108 : vector<16x32xf32> to vector<16x32xbf16>
    %cst_46 = arith.constant dense<0.000000e+00> : vector<16x224xf32>
    %114 = tpu.matmul %113, %109, %cst_46 {dimension_numbers = #tpu.dot_dimension_numbers<[1], [0], [0], [1], [0, 0, 1, 1], [], []>} : vector<16x32xbf16>, vector<32x224xbf16>, vector<16x224xf32> -> vector<16x224xf32>
    %115 = vector.broadcast %110 : vector<1x224xf32> to vector<16x224xf32>
    %116 = arith.addf %114, %115 : vector<16x224xf32>
    %117 = vector.extract_strided_slice %116 {offsets = [0, 0], sizes = [16, 64], strides = [1, 1]} : vector<16x224xf32> to vector<16x64xf32>
    %118 = vector.extract_strided_slice %116 {offsets = [0, 64], sizes = [16, 64], strides = [1, 1]} : vector<16x224xf32> to vector<16x64xf32>
    %119 = vector.extract_strided_slice %116 {offsets = [0, 128], sizes = [16, 64], strides = [1, 1]} : vector<16x224xf32> to vector<16x64xf32>
    %120 = vector.extract_strided_slice %116 {offsets = [0, 192], sizes = [16, 32], strides = [1, 1]} : vector<16x224xf32> to vector<16x32xf32>
    %cst_47 = arith.constant 0.000000e+00 : f32
    %121 = vector.broadcast %cst_47 : f32 to vector<16x32xf32>
    %122 = vector.extract_strided_slice %117 {offsets = [0, 0], sizes = [16, 32], strides = [1, 1]} : vector<16x64xf32> to vector<16x32xf32>
    %cst_48 = arith.constant 0.176776692 : f32
    %123 = vector.broadcast %cst_48 : f32 to vector<16x32xf32>
    %124 = arith.mulf %122, %123 : vector<16x32xf32>
    %125 = arith.truncf %124 : vector<16x32xf32> to vector<16x32xbf16>
    %126 = vector.extract_strided_slice %118 {offsets = [0, 0], sizes = [16, 32], strides = [1, 1]} : vector<16x64xf32> to vector<16x32xf32>
    %127 = arith.truncf %126 : vector<16x32xf32> to vector<16x32xbf16>
    %128 = vector.extract_strided_slice %119 {offsets = [0, 0], sizes = [16, 32], strides = [1, 1]} : vector<16x64xf32> to vector<16x32xf32>
    %129 = arith.truncf %128 : vector<16x32xf32> to vector<16x32xbf16>
    %cst_49 = arith.constant dense<0.000000e+00> : vector<16x16xf32>
    %130 = tpu.matmul %125, %127, %cst_49 {dimension_numbers = #tpu.dot_dimension_numbers<[1], [1], [0], [0], [0, 0, 1, 0], [], []>} : vector<16x32xbf16>, vector<16x32xbf16>, vector<16x16xf32> -> vector<16x16xf32>
    %131 = arith.addf %130, %6 : vector<16x16xf32>
    %cst_50 = arith.constant dense<0xFF800000> : vector<16xf32>
    %132 = vector.multi_reduction <maximumf>, %131, %cst_50 [1] : vector<16x16xf32> to vector<16xf32>
    %133 = vector.shape_cast %132 : vector<16xf32> to vector<16x1xf32>
    %cst_51 = arith.constant 0.000000e+00 : f32
    %134 = vector.broadcast %cst_51 : f32 to vector<16x1xf32>
    %135 = arith.select %10, %133, %134 : vector<16x1xi1>, vector<16x1xf32>
    %136 = vector.broadcast %135 : vector<16x1xf32> to vector<16x16xf32>
    %137 = arith.subf %131, %136 : vector<16x16xf32>
    %138 = math.exp %137 : vector<16x16xf32>
    %139 = arith.mulf %1, %138 : vector<16x16xf32>
    %cst_52 = arith.constant dense<0.000000e+00> : vector<16xf32>
    %140 = vector.multi_reduction <add>, %139, %cst_52 [1] : vector<16x16xf32> to vector<16xf32>
    %141 = vector.shape_cast %140 : vector<16xf32> to vector<16x1xf32>
    %cst_53 = arith.constant 1.000000e-30 : f32
    %142 = vector.broadcast %cst_53 : f32 to vector<16x1xf32>
    %143 = arith.maximumf %141, %142 : vector<16x1xf32>
    %144 = tpu.reciprocal %143 {approx = true} : vector<16x1xf32> -> vector<16x1xf32>
    %145 = vector.broadcast %144 : vector<16x1xf32> to vector<16x16xf32>
    %146 = arith.mulf %139, %145 : vector<16x16xf32>
    %147 = arith.truncf %146 : vector<16x16xf32> to vector<16x16xbf16>
    %cst_54 = arith.constant dense<0.000000e+00> : vector<16x32xf32>
    %148 = tpu.matmul %147, %129, %cst_54 {dimension_numbers = #tpu.dot_dimension_numbers<[1], [0], [0], [1], [0, 0, 1, 1], [], []>} : vector<16x16xbf16>, vector<16x32xbf16>, vector<16x32xf32> -> vector<16x32xf32>
    %149 = arith.addf %121, %148 : vector<16x32xf32>
    %150 = vector.extract_strided_slice %117 {offsets = [0, 32], sizes = [16, 32], strides = [1, 1]} : vector<16x64xf32> to vector<16x32xf32>
    %cst_55 = arith.constant 0.176776692 : f32
    %151 = vector.broadcast %cst_55 : f32 to vector<16x32xf32>
    %152 = arith.mulf %150, %151 : vector<16x32xf32>
    %153 = arith.truncf %152 : vector<16x32xf32> to vector<16x32xbf16>
    %154 = vector.extract_strided_slice %118 {offsets = [0, 32], sizes = [16, 32], strides = [1, 1]} : vector<16x64xf32> to vector<16x32xf32>
    %155 = arith.truncf %154 : vector<16x32xf32> to vector<16x32xbf16>
    %156 = vector.extract_strided_slice %119 {offsets = [0, 32], sizes = [16, 32], strides = [1, 1]} : vector<16x64xf32> to vector<16x32xf32>
    %157 = arith.truncf %156 : vector<16x32xf32> to vector<16x32xbf16>
    %cst_56 = arith.constant dense<0.000000e+00> : vector<16x16xf32>
    %158 = tpu.matmul %153, %155, %cst_56 {dimension_numbers = #tpu.dot_dimension_numbers<[1], [1], [0], [0], [0, 0, 1, 0], [], []>} : vector<16x32xbf16>, vector<16x32xbf16>, vector<16x16xf32> -> vector<16x16xf32>
    %159 = arith.addf %158, %6 : vector<16x16xf32>
    %cst_57 = arith.constant dense<0xFF800000> : vector<16xf32>
    %160 = vector.multi_reduction <maximumf>, %159, %cst_57 [1] : vector<16x16xf32> to vector<16xf32>
    %161 = vector.shape_cast %160 : vector<16xf32> to vector<16x1xf32>
    %cst_58 = arith.constant 0.000000e+00 : f32
    %162 = vector.broadcast %cst_58 : f32 to vector<16x1xf32>
    %163 = arith.select %10, %161, %162 : vector<16x1xi1>, vector<16x1xf32>
    %164 = vector.broadcast %163 : vector<16x1xf32> to vector<16x16xf32>
    %165 = arith.subf %159, %164 : vector<16x16xf32>
    %166 = math.exp %165 : vector<16x16xf32>
    %167 = arith.mulf %1, %166 : vector<16x16xf32>
    %cst_59 = arith.constant dense<0.000000e+00> : vector<16xf32>
    %168 = vector.multi_reduction <add>, %167, %cst_59 [1] : vector<16x16xf32> to vector<16xf32>
    %169 = vector.shape_cast %168 : vector<16xf32> to vector<16x1xf32>
    %cst_60 = arith.constant 1.000000e-30 : f32
    %170 = vector.broadcast %cst_60 : f32 to vector<16x1xf32>
    %171 = arith.maximumf %169, %170 : vector<16x1xf32>
    %172 = tpu.reciprocal %171 {approx = true} : vector<16x1xf32> -> vector<16x1xf32>
    %173 = vector.broadcast %172 : vector<16x1xf32> to vector<16x16xf32>
    %174 = arith.mulf %167, %173 : vector<16x16xf32>
    %175 = arith.truncf %174 : vector<16x16xf32> to vector<16x16xbf16>
    %cst_61 = arith.constant dense<0.000000e+00> : vector<16x32xf32>
    %176 = tpu.matmul %175, %157, %cst_61 {dimension_numbers = #tpu.dot_dimension_numbers<[1], [0], [0], [1], [0, 0, 1, 1], [], []>} : vector<16x16xbf16>, vector<16x32xbf16>, vector<16x32xf32> -> vector<16x32xf32>
    %177 = arith.addf %149, %176 : vector<16x32xf32>
    %cst_62 = arith.constant 5.000000e-01 : f32
    %178 = vector.broadcast %cst_62 : f32 to vector<16x32xf32>
    %179 = arith.mulf %177, %178 : vector<16x32xf32>
    %180 = arith.addf %179, %120 : vector<16x32xf32>
    %cst_63 = arith.constant 0.000000e+00 : f32
    %181 = vector.broadcast %cst_63 : f32 to vector<16x32xf32>
    %182 = arith.maximumf %180, %181 : vector<16x32xf32>
    %cst_64 = arith.constant dense<0.000000e+00> : vector<16xf32>
    %183 = vector.multi_reduction <add>, %182, %cst_64 [1] : vector<16x32xf32> to vector<16xf32>
    %184 = vector.shape_cast %183 : vector<16xf32> to vector<16x1xf32>
    %cst_65 = arith.constant 3.200000e+01 : f32
    %185 = vector.broadcast %cst_65 : f32 to vector<16x1xf32>
    %186 = arith.divf %184, %185 : vector<16x1xf32>
    %187 = vector.broadcast %186 : vector<16x1xf32> to vector<16x32xf32>
    %188 = arith.subf %182, %187 : vector<16x32xf32>
    %189 = arith.mulf %188, %188 : vector<16x32xf32>
    %cst_66 = arith.constant dense<0.000000e+00> : vector<16xf32>
    %190 = vector.multi_reduction <add>, %189, %cst_66 [1] : vector<16x32xf32> to vector<16xf32>
    %191 = vector.shape_cast %190 : vector<16xf32> to vector<16x1xf32>
    %cst_67 = arith.constant 3.200000e+01 : f32
    %192 = vector.broadcast %cst_67 : f32 to vector<16x1xf32>
    %193 = arith.divf %191, %192 : vector<16x1xf32>
    %194 = vector.broadcast %186 : vector<16x1xf32> to vector<16x32xf32>
    %195 = arith.subf %182, %194 : vector<16x32xf32>
    %cst_68 = arith.constant 9.99999974E-6 : f32
    %196 = vector.broadcast %cst_68 : f32 to vector<16x1xf32>
    %197 = arith.addf %193, %196 : vector<16x1xf32>
    %198 = math.rsqrt %197 : vector<16x1xf32>
    %199 = vector.broadcast %198 : vector<16x1xf32> to vector<16x32xf32>
    %200 = arith.mulf %195, %199 : vector<16x32xf32>
    %201 = vector.broadcast %111 : vector<1x32xf32> to vector<16x32xf32>
    %202 = arith.mulf %200, %201 : vector<16x32xf32>
    %203 = vector.broadcast %112 : vector<1x32xf32> to vector<16x32xf32>
    %204 = arith.addf %202, %203 : vector<16x32xf32>
    %c0_69 = arith.constant 0 : index
    %c0_70 = arith.constant 0 : index
    %205 = vector.load %arg14[%c0_69, %c0_70] : memref<32x224xbf16, #tpu.memory_space<vmem>>, vector<32x224xbf16>
    %c0_71 = arith.constant 0 : index
    %c0_72 = arith.constant 0 : index
    %206 = vector.load %arg15[%c0_71, %c0_72] : memref<1x224xf32, #tpu.memory_space<vmem>>, vector<1x224xf32>
    %207 = arith.truncf %204 : vector<16x32xf32> to vector<16x32xbf16>
    %cst_73 = arith.constant dense<0.000000e+00> : vector<16x224xf32>
    %208 = tpu.matmul %207, %205, %cst_73 {dimension_numbers = #tpu.dot_dimension_numbers<[1], [0], [0], [1], [0, 0, 1, 1], [], []>} : vector<16x32xbf16>, vector<32x224xbf16>, vector<16x224xf32> -> vector<16x224xf32>
    %209 = vector.broadcast %206 : vector<1x224xf32> to vector<16x224xf32>
    %210 = arith.addf %208, %209 : vector<16x224xf32>
    %211 = vector.extract_strided_slice %210 {offsets = [0, 0], sizes = [16, 64], strides = [1, 1]} : vector<16x224xf32> to vector<16x64xf32>
    %212 = vector.extract_strided_slice %210 {offsets = [0, 64], sizes = [16, 64], strides = [1, 1]} : vector<16x224xf32> to vector<16x64xf32>
    %213 = vector.extract_strided_slice %210 {offsets = [0, 128], sizes = [16, 64], strides = [1, 1]} : vector<16x224xf32> to vector<16x64xf32>
    %214 = vector.extract_strided_slice %210 {offsets = [0, 192], sizes = [16, 32], strides = [1, 1]} : vector<16x224xf32> to vector<16x32xf32>
    %cst_74 = arith.constant 0.000000e+00 : f32
    %215 = vector.broadcast %cst_74 : f32 to vector<16x32xf32>
    %216 = vector.extract_strided_slice %211 {offsets = [0, 0], sizes = [16, 32], strides = [1, 1]} : vector<16x64xf32> to vector<16x32xf32>
    %cst_75 = arith.constant 0.176776692 : f32
    %217 = vector.broadcast %cst_75 : f32 to vector<16x32xf32>
    %218 = arith.mulf %216, %217 : vector<16x32xf32>
    %219 = arith.truncf %218 : vector<16x32xf32> to vector<16x32xbf16>
    %220 = vector.extract_strided_slice %212 {offsets = [0, 0], sizes = [16, 32], strides = [1, 1]} : vector<16x64xf32> to vector<16x32xf32>
    %221 = arith.truncf %220 : vector<16x32xf32> to vector<16x32xbf16>
    %222 = vector.extract_strided_slice %213 {offsets = [0, 0], sizes = [16, 32], strides = [1, 1]} : vector<16x64xf32> to vector<16x32xf32>
    %223 = arith.truncf %222 : vector<16x32xf32> to vector<16x32xbf16>
    %cst_76 = arith.constant dense<0.000000e+00> : vector<16x16xf32>
    %224 = tpu.matmul %219, %221, %cst_76 {dimension_numbers = #tpu.dot_dimension_numbers<[1], [1], [0], [0], [0, 0, 1, 0], [], []>} : vector<16x32xbf16>, vector<16x32xbf16>, vector<16x16xf32> -> vector<16x16xf32>
    %225 = arith.addf %224, %6 : vector<16x16xf32>
    %cst_77 = arith.constant dense<0xFF800000> : vector<16xf32>
    %226 = vector.multi_reduction <maximumf>, %225, %cst_77 [1] : vector<16x16xf32> to vector<16xf32>
    %227 = vector.shape_cast %226 : vector<16xf32> to vector<16x1xf32>
    %cst_78 = arith.constant 0.000000e+00 : f32
    %228 = vector.broadcast %cst_78 : f32 to vector<16x1xf32>
    %229 = arith.select %10, %227, %228 : vector<16x1xi1>, vector<16x1xf32>
    %230 = vector.broadcast %229 : vector<16x1xf32> to vector<16x16xf32>
    %231 = arith.subf %225, %230 : vector<16x16xf32>
    %232 = math.exp %231 : vector<16x16xf32>
    %233 = arith.mulf %1, %232 : vector<16x16xf32>
    %cst_79 = arith.constant dense<0.000000e+00> : vector<16xf32>
    %234 = vector.multi_reduction <add>, %233, %cst_79 [1] : vector<16x16xf32> to vector<16xf32>
    %235 = vector.shape_cast %234 : vector<16xf32> to vector<16x1xf32>
    %cst_80 = arith.constant 1.000000e-30 : f32
    %236 = vector.broadcast %cst_80 : f32 to vector<16x1xf32>
    %237 = arith.maximumf %235, %236 : vector<16x1xf32>
    %238 = tpu.reciprocal %237 {approx = true} : vector<16x1xf32> -> vector<16x1xf32>
    %239 = vector.broadcast %238 : vector<16x1xf32> to vector<16x16xf32>
    %240 = arith.mulf %233, %239 : vector<16x16xf32>
    %241 = arith.truncf %240 : vector<16x16xf32> to vector<16x16xbf16>
    %cst_81 = arith.constant dense<0.000000e+00> : vector<16x32xf32>
    %242 = tpu.matmul %241, %223, %cst_81 {dimension_numbers = #tpu.dot_dimension_numbers<[1], [0], [0], [1], [0, 0, 1, 1], [], []>} : vector<16x16xbf16>, vector<16x32xbf16>, vector<16x32xf32> -> vector<16x32xf32>
    %243 = arith.addf %215, %242 : vector<16x32xf32>
    %244 = vector.extract_strided_slice %211 {offsets = [0, 32], sizes = [16, 32], strides = [1, 1]} : vector<16x64xf32> to vector<16x32xf32>
    %cst_82 = arith.constant 0.176776692 : f32
    %245 = vector.broadcast %cst_82 : f32 to vector<16x32xf32>
    %246 = arith.mulf %244, %245 : vector<16x32xf32>
    %247 = arith.truncf %246 : vector<16x32xf32> to vector<16x32xbf16>
    %248 = vector.extract_strided_slice %212 {offsets = [0, 32], sizes = [16, 32], strides = [1, 1]} : vector<16x64xf32> to vector<16x32xf32>
    %249 = arith.truncf %248 : vector<16x32xf32> to vector<16x32xbf16>
    %250 = vector.extract_strided_slice %213 {offsets = [0, 32], sizes = [16, 32], strides = [1, 1]} : vector<16x64xf32> to vector<16x32xf32>
    %251 = arith.truncf %250 : vector<16x32xf32> to vector<16x32xbf16>
    %cst_83 = arith.constant dense<0.000000e+00> : vector<16x16xf32>
    %252 = tpu.matmul %247, %249, %cst_83 {dimension_numbers = #tpu.dot_dimension_numbers<[1], [1], [0], [0], [0, 0, 1, 0], [], []>} : vector<16x32xbf16>, vector<16x32xbf16>, vector<16x16xf32> -> vector<16x16xf32>
    %253 = arith.addf %252, %6 : vector<16x16xf32>
    %cst_84 = arith.constant dense<0xFF800000> : vector<16xf32>
    %254 = vector.multi_reduction <maximumf>, %253, %cst_84 [1] : vector<16x16xf32> to vector<16xf32>
    %255 = vector.shape_cast %254 : vector<16xf32> to vector<16x1xf32>
    %cst_85 = arith.constant 0.000000e+00 : f32
    %256 = vector.broadcast %cst_85 : f32 to vector<16x1xf32>
    %257 = arith.select %10, %255, %256 : vector<16x1xi1>, vector<16x1xf32>
    %258 = vector.broadcast %257 : vector<16x1xf32> to vector<16x16xf32>
    %259 = arith.subf %253, %258 : vector<16x16xf32>
    %260 = math.exp %259 : vector<16x16xf32>
    %261 = arith.mulf %1, %260 : vector<16x16xf32>
    %cst_86 = arith.constant dense<0.000000e+00> : vector<16xf32>
    %262 = vector.multi_reduction <add>, %261, %cst_86 [1] : vector<16x16xf32> to vector<16xf32>
    %263 = vector.shape_cast %262 : vector<16xf32> to vector<16x1xf32>
    %cst_87 = arith.constant 1.000000e-30 : f32
    %264 = vector.broadcast %cst_87 : f32 to vector<16x1xf32>
    %265 = arith.maximumf %263, %264 : vector<16x1xf32>
    %266 = tpu.reciprocal %265 {approx = true} : vector<16x1xf32> -> vector<16x1xf32>
    %267 = vector.broadcast %266 : vector<16x1xf32> to vector<16x16xf32>
    %268 = arith.mulf %261, %267 : vector<16x16xf32>
    %269 = arith.truncf %268 : vector<16x16xf32> to vector<16x16xbf16>
    %cst_88 = arith.constant dense<0.000000e+00> : vector<16x32xf32>
    %270 = tpu.matmul %269, %251, %cst_88 {dimension_numbers = #tpu.dot_dimension_numbers<[1], [0], [0], [1], [0, 0, 1, 1], [], []>} : vector<16x16xbf16>, vector<16x32xbf16>, vector<16x32xf32> -> vector<16x32xf32>
    %271 = arith.addf %243, %270 : vector<16x32xf32>
    %cst_89 = arith.constant 5.000000e-01 : f32
    %272 = vector.broadcast %cst_89 : f32 to vector<16x32xf32>
    %273 = arith.mulf %271, %272 : vector<16x32xf32>
    %274 = arith.addf %273, %214 : vector<16x32xf32>
    %cst_90 = arith.constant 0.000000e+00 : f32
    %275 = vector.broadcast %cst_90 : f32 to vector<16x32xf32>
    %276 = arith.maximumf %274, %275 : vector<16x32xf32>
    %c0_91 = arith.constant 0 : index
    %c0_92 = arith.constant 0 : index
    %277 = vector.load %arg2[%c0_91, %c0_92] : memref<2x16xbf16, #tpu.memory_space<vmem>>, vector<2x16xbf16>
    %278 = arith.truncf %276 : vector<16x32xf32> to vector<16x32xbf16>
    %cst_93 = arith.constant dense<0.000000e+00> : vector<2x32xf32>
    %279 = tpu.matmul %277, %278, %cst_93 {dimension_numbers = #tpu.dot_dimension_numbers<[1], [0], [0], [1], [0, 0, 1, 1], [], []>} : vector<2x16xbf16>, vector<16x32xbf16>, vector<2x32xf32> -> vector<2x32xf32>
    %c0_94 = arith.constant 0 : index
    %c0_95 = arith.constant 0 : index
    %280 = vector.load %arg3[%c0_94, %c0_95] : memref<2x1xf32, #tpu.memory_space<vmem>>, vector<2x1xf32>
    %281 = vector.broadcast %280 : vector<2x1xf32> to vector<2x32xf32>
    %282 = arith.mulf %279, %281 : vector<2x32xf32>
    %283 = arith.truncf %282 : vector<2x32xf32> to vector<2x32xbf16>
    %c0_96 = arith.constant 0 : index
    %c0_97 = arith.constant 0 : index
    %284 = vector.load %arg4[%c0_96, %c0_97] : memref<32x1xbf16, #tpu.memory_space<vmem>>, vector<32x1xbf16>
    %cst_98 = arith.constant dense<0.000000e+00> : vector<2x1xf32>
    %285 = tpu.matmul %283, %284, %cst_98 {dimension_numbers = #tpu.dot_dimension_numbers<[1], [0], [0], [1], [0, 0, 1, 1], [], []>} : vector<2x32xbf16>, vector<32x1xbf16>, vector<2x1xf32> -> vector<2x1xf32>
    %c0_99 = arith.constant 0 : index
    %c0_100 = arith.constant 0 : index
    %286 = vector.load %arg5[%c0_99, %c0_100] : memref<1x1xf32, #tpu.memory_space<vmem>>, vector<1x1xf32>
    %287 = vector.broadcast %286 : vector<1x1xf32> to vector<2x1xf32>
    %288 = arith.addf %285, %287 : vector<2x1xf32>
    %c0_101 = arith.constant 0 : index
    %c0_102 = arith.constant 0 : index
    %289 = vector.load %arg16[%c0_101, %c0_102] : memref<2x1xf32, #tpu.memory_space<vmem>>, vector<2x1xf32>
    tpu.vector_store %arg16[%c0_101, %c0_102], %288 {strides = array<i32>} : memref<2x1xf32, #tpu.memory_space<vmem>>, vector<2x1xf32>,
    return
  }
}

</mosaic_0001>

<llo_original>
// kernel: tpu_custom_call.1
$region0: #{tpu_custom_call.1}
  #allocation0 [shape = 'u32[]', space=smem, size = 0x4, offset = 0x4, fixed_abs, tag = 'smem constant byte address 0x4 - core index']
  #allocation1 [shape = 'u32[144,128]{1,0:T(1,128)}', space=vmem, size = 0x12000, scoped, tag = 'internal scratch']
  #allocation2 [shape = 'f32[1,1]{1,0:T(1,128)S(1)}', space=vmem, size = 0x200, scoped, tag = 'scoped memory for tpu_custom_call.1']
  %s0 = inlined_call_operand.hbm [shape: bf16[16,16], index: 0, kind: input, shape index: {}]
  %s1 = inlined_call_operand.hbm [shape: bf16[16,16], index: 1, kind: input, shape index: {}]
  %s2 = inlined_call_operand.hbm [shape: bf16[2,16], index: 2, kind: input, shape index: {}]
  %s3 = inlined_call_operand.vmem [shape: f32[2,1], index: 3, kind: input, shape index: {}]
  %s4 = inlined_call_operand.vmem [shape: bf16[32,1], index: 4, kind: input, shape index: {}]
  %s5 = inlined_call_operand.<no memory space> [shape: f32[1,1], index: 5, kind: input, shape index: {}]
  %s6 = inlined_call_operand.hbm [shape: bf16[16,224], index: 6, kind: input, shape index: {}]
  %s7 = inlined_call_operand.vmem [shape: f32[1,224], index: 7, kind: input, shape index: {}]
  %s8 = inlined_call_operand.hbm [shape: f32[1,32], index: 8, kind: input, shape index: {}]
  %s9 = inlined_call_operand.hbm [shape: f32[1,32], index: 9, kind: input, shape index: {}]
  %s10 = inlined_call_operand.vmem [shape: bf16[32,224], index: 10, kind: input, shape index: {}]
  %s11 = inlined_call_operand.vmem [shape: f32[1,224], index: 11, kind: input, shape index: {}]
  %s12 = inlined_call_operand.vmem [shape: f32[1,32], index: 12, kind: input, shape index: {}]
  %s13 = inlined_call_operand.vmem [shape: f32[1,32], index: 13, kind: input, shape index: {}]
  %s14 = inlined_call_operand.hbm [shape: bf16[32,224], index: 14, kind: input, shape index: {}]
  %s15 = inlined_call_operand.vmem [shape: f32[1,224], index: 15, kind: input, shape index: {}]
  %s16 = inlined_call_operand.vmem [shape: f32[2,1], index: 16, kind: output, shape index: {}]
  %s17 = sld [smem:[#allocation0]]
  $region102: #{tpu_custom_call.1} parent=0
    _
  %s19 = ssub.s32 1, %s17
  %s20 = scalar_select 0, %s19, %s17
  %v21 = vstv %s5
  %22 = vst [vmem:[#allocation2] sm:$0x1] %v21
  $region1: #{tpu_custom_call.1} parent=0
    #allocation3 [shape = 'u8[4096]{0}', space=vmem, size = 0x1000, scoped, tag = 'input window, operand 0, single buffered']
    #allocation4 [shape = 's32[1]{0}', space=sflag, size = 0x4, scoped, tag = 'scoped memory for tpu_custom_call.1']
    #allocation5 [shape = 'u8[4096]{0}', space=vmem, size = 0x1000, scoped, tag = 'input window, operand 1, single buffered']
    #allocation6 [shape = 's32[1]{0}', space=sflag, size = 0x4, scoped, tag = 'scoped memory for tpu_custom_call.1']
    #allocation7 [shape = 'u8[512]{0}', space=vmem, size = 0x400, scoped, tag = 'input window, operand 2, single buffered']
    #allocation8 [shape = 'u8[8192]{0}', space=vmem, size = 0x2000, scoped, tag = 'input window, operand 6, single buffered']
    #allocation9 [shape = 's32[1]{0}', space=sflag, size = 0x4, scoped, tag = 'scoped memory for tpu_custom_call.1']
    #allocation10 [shape = 'u8[512]{0}', space=vmem, size = 0x400, scoped, tag = 'input window, operand 8, single buffered']
    #allocation11 [shape = 'u8[512]{0}', space=vmem, size = 0x400, scoped, tag = 'input window, operand 9, single buffered']
    #allocation12 [shape = 's32[1]{0}', space=sflag, size = 0x4, scoped, tag = 'scoped memory for tpu_custom_call.1']
    #allocation13 [shape = 'u8[16384]{0}', space=vmem, size = 0x4000, scoped, tag = 'input window, operand 14, single buffered']
    %23 = vsyncpa [#allocation4], 0
    %24 = vsyncpa [#allocation6], 0
    %25 = vsyncpa [#allocation9], 0
    %26 = vsyncpa [#allocation12], 0
    // Predicated region
    $region2: #{tpu_custom_call.1} parent=1 // pred_check
      _
    $region3: #{tpu_custom_call.1} parent=1 // pred_check_branch
      %28 = sbr.rel (0) target = $region5
    $region4: #{tpu_custom_call.1} parent=1 // pred_region
      %s30 = ssub.s32 128, 128
      %31 = vsyncadd [#allocation4], %s30
      %s32 = sshll.u32 [#allocation3], 4
      %s33 = int_to_ptr.vmem [resolvable:$true] %s32
      %38 = dma.hbm_to_vmem [thread:$0]  %s0, 128, %s33, [#allocation4], 64, 64, 4
    $region5: #{tpu_custom_call.1} parent=1 // pred_fallthru
      _
    // Predicated region
    $region6: #{tpu_custom_call.1} parent=1 // pred_check
      _
    $region7: #{tpu_custom_call.1} parent=1 // pred_check_branch
      %40 = sbr.rel (0) target = $region9
    $region8: #{tpu_custom_call.1} parent=1 // pred_region
      %s42 = ssub.s32 128, 128
      %43 = vsyncadd [#allocation6], %s42
      %s44 = sshll.u32 [#allocation5], 4
      %s45 = int_to_ptr.vmem [resolvable:$true] %s44
      %50 = dma.hbm_to_vmem [thread:$0]  %s1, 128, %s45, [#allocation6], 64, 64, 4
    $region9: #{tpu_custom_call.1} parent=1 // pred_fallthru
      _
    // Predicated region
    $region10: #{tpu_custom_call.1} parent=1 // pred_check
      _
    $region11: #{tpu_custom_call.1} parent=1 // pred_check_branch
      %52 = sbr.rel (0) target = $region13
    $region12: #{tpu_custom_call.1} parent=1 // pred_region
      %s54 = ssub.s32 16, 16
      %55 = vsyncadd [#allocation6], %s54
      %s57 = sshll.u32 [#allocation7], 4
      %s58 = int_to_ptr.vmem [resolvable:$true] %s57
      %60 = dma.hbm_to_vmem [thread:$0]  %s2, 16, %s58, [#allocation6]
    $region13: #{tpu_custom_call.1} parent=1 // pred_fallthru
      _
    // Predicated region
    $region14: #{tpu_custom_call.1} parent=1 // pred_check
      _
    $region15: #{tpu_custom_call.1} parent=1 // pred_check_branch
      %62 = sbr.rel (0) target = $region17
    $region16: #{tpu_custom_call.1} parent=1 // pred_region
      _
    $region17: #{tpu_custom_call.1} parent=1 // pred_fallthru
      _
    // Predicated region
    $region18: #{tpu_custom_call.1} parent=1 // pred_check
      _
    $region19: #{tpu_custom_call.1} parent=1 // pred_check_branch
      %64 = sbr.rel (0) target = $region21
    $region20: #{tpu_custom_call.1} parent=1 // pred_region
      _
    $region21: #{tpu_custom_call.1} parent=1 // pred_fallthru
      _
    // Predicated region
    $region22: #{tpu_custom_call.1} parent=1 // pred_check
      _
    $region23: #{tpu_custom_call.1} parent=1 // pred_check_branch
      %66 = sbr.rel (0) target = $region25
    $region24: #{tpu_custom_call.1} parent=1 // pred_region
      _
    $region25: #{tpu_custom_call.1} parent=1 // pred_fallthru
      _
    // Predicated region
    $region26: #{tpu_custom_call.1} parent=1 // pred_check
      _
    $region27: #{tpu_custom_call.1} parent=1 // pred_check_branch
      %68 = sbr.rel (0) target = $region29
    $region28: #{tpu_custom_call.1} parent=1 // pred_region
      %s70 = ssub.s32 256, 256
      %71 = vsyncadd [#allocation9], %s70
      %s72 = sshll.u32 [#allocation8], 4
      %s73 = int_to_ptr.vmem [resolvable:$true] %s72
      %78 = dma.hbm_to_vmem [thread:$0]  %s6, 256, %s73, [#allocation9], 128, 128, 8
    $region29: #{tpu_custom_call.1} parent=1 // pred_fallthru
      _
    // Predicated region
    $region30: #{tpu_custom_call.1} parent=1 // pred_check
      _
    $region31: #{tpu_custom_call.1} parent=1 // pred_check_branch
      %80 = sbr.rel (0) target = $region33
    $region32: #{tpu_custom_call.1} parent=1 // pred_region
      _
    $region33: #{tpu_custom_call.1} parent=1 // pred_fallthru
      _
    // Predicated region
    $region34: #{tpu_custom_call.1} parent=1 // pred_check
      _
    $region35: #{tpu_custom_call.1} parent=1 // pred_check_branch
      %82 = sbr.rel (0) target = $region37
    $region36: #{tpu_custom_call.1} parent=1 // pred_region
      %s84 = ssub.s32 16, 16
      %85 = vsyncadd [#allocation9], %s84
      %s87 = sshll.u32 [#allocation10], 4
      %s88 = int_to_ptr.vmem [resolvable:$true] %s87
      %90 = dma.hbm_to_vmem [thread:$0]  %s8, 16, %s88, [#allocation9]
    $region37: #{tpu_custom_call.1} parent=1 // pred_fallthru
      _
    // Predicated region
    $region38: #{tpu_custom_call.1} parent=1 // pred_check
      _
    $region39: #{tpu_custom_call.1} parent=1 // pred_check_branch
      %92 = sbr.rel (0) target = $region41
    $region40: #{tpu_custom_call.1} parent=1 // pred_region
      %s94 = ssub.s32 16, 16
      %95 = vsyncadd [#allocation12], %s94
      %s97 = sshll.u32 [#allocation11], 4
      %s98 = int_to_ptr.vmem [resolvable:$true] %s97
      %100 = dma.hbm_to_vmem [thread:$0]  %s9, 16, %s98, [#allocation12]
    $region41: #{tpu_custom_call.1} parent=1 // pred_fallthru
      _
    // Predicated region
    $region42: #{tpu_custom_call.1} parent=1 // pred_check
      _
    $region43: #{tpu_custom_call.1} parent=1 // pred_check_branch
      %102 = sbr.rel (0) target = $region45
    $region44: #{tpu_custom_call.1} parent=1 // pred_region
      _
    $region45: #{tpu_custom_call.1} parent=1 // pred_fallthru
      _
    // Predicated region
    $region46: #{tpu_custom_call.1} parent=1 // pred_check
      _
    $region47: #{tpu_custom_call.1} parent=1 // pred_check_branch
      %104 = sbr.rel (0) target = $region49
    $region48: #{tpu_custom_call.1} parent=1 // pred_region
      _
    $region49: #{tpu_custom_call.1} parent=1 // pred_fallthru
      _
    // Predicated region
    $region50: #{tpu_custom_call.1} parent=1 // pred_check
      _
    $region51: #{tpu_custom_call.1} parent=1 // pred_check_branch
      %106 = sbr.rel (0) target = $region53
    $region52: #{tpu_custom_call.1} parent=1 // pred_region
      _
    $region53: #{tpu_custom_call.1} parent=1 // pred_fallthru
      _
    // Predicated region
    $region54: #{tpu_custom_call.1} parent=1 // pred_check
      _
    $region55: #{tpu_custom_call.1} parent=1 // pred_check_branch
      %108 = sbr.rel (0) target = $region57
    $region56: #{tpu_custom_call.1} parent=1 // pred_region
      _
    $region57: #{tpu_custom_call.1} parent=1 // pred_fallthru
      _
    // Predicated region
    $region58: #{tpu_custom_call.1} parent=1 // pred_check
      _
    $region59: #{tpu_custom_call.1} parent=1 // pred_check_branch
      %110 = sbr.rel (0) target = $region61
    $region60: #{tpu_custom_call.1} parent=1 // pred_region
      %s112 = ssub.s32 512, 512
      %113 = vsyncadd [#allocation12], %s112
      %s114 = sshll.u32 [#allocation13], 4
      %s115 = int_to_ptr.vmem [resolvable:$true] %s114
      %120 = dma.hbm_to_vmem [thread:$0]  %s14, 512, %s115, [#allocation12], 128, 128, 8
    $region61: #{tpu_custom_call.1} parent=1 // pred_fallthru
      _
    // Predicated region
    $region62: #{tpu_custom_call.1} parent=1 // pred_check
      _
    $region63: #{tpu_custom_call.1} parent=1 // pred_check_branch
      %122 = sbr.rel (0) target = $region65
    $region64: #{tpu_custom_call.1} parent=1 // pred_region
      _
    $region65: #{tpu_custom_call.1} parent=1 // pred_fallthru
      _
    // Predicated region
    $region66: #{tpu_custom_call.1} parent=1 // pred_check
      _
    $region67: #{tpu_custom_call.1} parent=1 // pred_check_branch
      %124 = sbr.rel (0) target = $region69
    $region68: #{tpu_custom_call.1} parent=1 // pred_region
      %125 = dma.done [#allocation4], 128
    $region69: #{tpu_custom_call.1} parent=1 // pred_fallthru
      _
    // Predicated region
    $region70: #{tpu_custom_call.1} parent=1 // pred_check
      _
    $region71: #{tpu_custom_call.1} parent=1 // pred_check_branch
      %127 = sbr.rel (0) target = $region73
    $region72: #{tpu_custom_call.1} parent=1 // pred_region
      %128 = dma.done [#allocation6], 128
    $region73: #{tpu_custom_call.1} parent=1 // pred_fallthru
      _
    // Predicated region
    $region74: #{tpu_custom_call.1} parent=1 // pred_check
      _
    $region75: #{tpu_custom_call.1} parent=1 // pred_check_branch
      %130 = sbr.rel (0) target = $region77
    $region76: #{tpu_custom_call.1} parent=1 // pred_region
      %131 = dma.done [#allocation6], 16
    $region77: #{tpu_custom_call.1} parent=1 // pred_fallthru
      _
    // Predicated region
    $region78: #{tpu_custom_call.1} parent=1 // pred_check
      _
    $region79: #{tpu_custom_call.1} parent=1 // pred_check_branch
      %133 = sbr.rel (0) target = $region81
    $region80: #{tpu_custom_call.1} parent=1 // pred_region
      %134 = dma.done [#allocation9], 256
    $region81: #{tpu_custom_call.1} parent=1 // pred_fallthru
      _
    // Predicated region
    $region82: #{tpu_custom_call.1} parent=1 // pred_check
      _
    $region83: #{tpu_custom_call.1} parent=1 // pred_check_branch
      %136 = sbr.rel (0) target = $region85
    $region84: #{tpu_custom_call.1} parent=1 // pred_region
      %137 = dma.done [#allocation9], 16
    $region85: #{tpu_custom_call.1} parent=1 // pred_fallthru
      _
    // Predicated region
    $region86: #{tpu_custom_call.1} parent=1 // pred_check
      _
    $region87: #{tpu_custom_call.1} parent=1 // pred_check_branch
      %139 = sbr.rel (0) target = $region89
    $region88: #{tpu_custom_call.1} parent=1 // pred_region
      %140 = dma.done [#allocation12], 16
    $region89: #{tpu_custom_call.1} parent=1 // pred_fallthru
      _
    // Predicated region
    $region90: #{tpu_custom_call.1} parent=1 // pred_check
      _
    $region91: #{tpu_custom_call.1} parent=1 // pred_check_branch
      %142 = sbr.rel (0) target = $region93
    $region92: #{tpu_custom_call.1} parent=1 // pred_region
      %143 = dma.done [#allocation12], 512
    $region93: #{tpu_custom_call.1} parent=1 // pred_fallthru
      _
    %v145 = vld [vmem:[#allocation5] sm:$0xf]
    %v146 = vld [vmem:[#allocation5 + $0x4] sm:$0xf]
    %v147 = vunpack.c.l.bf16 %v145
    %v148 = vunpack.c.l.bf16 %v146
    %vm149 = vcmp.gt.f32.partialorder %v147, 0.0
    %vm150 = vcmp.gt.f32.partialorder %v148, 0.0
    %v151 = vsel %vm149, 0.0, -1e+30
    %v152 = vsel %vm150, 0.0, -1e+30
    %vm153 = vcmask 130048
    %v154 = vsel %vm153, %v147, 0.0
    %155 = vadd.xlane.f32.xlu0 %v154
    %v156 = vpop.xlane.xlu0 %155
    %v157 = vsel %vm153, %v148, 0.0
    %158 = vadd.xlane.f32.xlu0 %v157
    %v159 = vpop.xlane.xlu0 %158
    %vm160 = vcmp.gt.f32.partialorder %v156, 0.0
    %vm161 = vcmp.gt.f32.partialorder %v159, 0.0
    %v162 = vld [vmem:[#allocation3] sm:$0xf]
    %v163 = vld [vmem:[#allocation3 + $0x4] sm:$0xf]
    %v164 = vld [vmem:[#allocation8] sm:$0xff]
    %v165 = vld [vmem:[#allocation8 + $0x8] sm:$0xff]
    %v166 = vld [vmem:[%s7] sm:$0x3]
    %v167 = vld [vmem:[#allocation10] sm:$0x1]
    %v168 = vld [vmem:[#allocation11] sm:$0x1]
    %v170 = vlaneseq
    %v171 = vshrl.u32 %v170, 7
    %v172 = vsub.s32 0, %v171
    %v173 = vrot.slane %v166, %v172
    %v174 = vlaneseq
    %v175 = vshrl.u32 %v174, 7
    %v176 = vsub.s32 1, %v175
    %v177 = vrot.slane %v166, %v176
    %v182 = vunpack.c.l.b16 %v162
    %v183 = vunpack.c.l.b16 %v163
    %v184 = vpack.c.b16 %v183, %v182
    %v187 = vunpack.c.l.b16 %v164
    %v188 = vunpack.c.h.b16 %v164
    %v189 = vunpack.c.l.b16 %v165
    %v190 = vunpack.c.h.b16 %v165
    %v191 = vpack.c.b16 %v189, %v187
    %v192 = vpack.c.b16 %v190, %v188
    %v196 = vsel %vm153, %v184, 0
    %198 = vmatprep.subr.bf16.mxu0 0
    %199 = vmatpush1.bf16.msra.mxu0 0
    %200 = vmatprep.subr.bf16.mxu0 0
    %201 = vmatpush1.bf16.msra.mxu0 0
    %202 = vmatprep.subr.bf16.mxu0 0
    %203 = vmatpush1.bf16.msra.mxu0 0
    %204 = vmatprep.subr.bf16.mxu0 0
    %205 = vmatpush1.bf16.msra.mxu0 0
    %206 = vmatprep.subr.bf16.mxu0 0
    %207 = vmatpush1.bf16.msra.mxu0 0
    %208 = vmatprep.subr.bf16.mxu0 0
    %209 = vmatpush1.bf16.msra.mxu0 0
    %210 = vmatprep.subr.bf16.mxu0 0
    %211 = vmatpush1.bf16.msra.mxu0 0
    %212 = vmatprep.subr.bf16.mxu0 %v192
    %213 = vmatpush1.bf16.msra.mxu0 %v191
    %214 = vmatprep.subr.bf16.mxu0 0
    %215 = vmatpush2.bf16.msra.mxu0 0
    %216 = vmatprep.subr.bf16.mxu0 0
    %217 = vmatpush2.bf16.msra.mxu0 0
    %218 = vmatprep.subr.bf16.mxu0 0
    %219 = vmatpush2.bf16.msra.mxu0 0
    %220 = vmatprep.subr.bf16.mxu0 0
    %221 = vmatpush2.bf16.msra.mxu0 0
    %222 = vmatprep.subr.bf16.mxu0 0
    %223 = vmatpush2.bf16.msra.mxu0 0
    %224 = vmatprep.subr.bf16.mxu0 0
    %225 = vmatpush2.bf16.msra.mxu0 0
    %226 = vmatprep.subr.bf16.mxu0 0
    %227 = vmatpush2.bf16.msra.mxu0 0
    %228 = vmatprep.subr.bf16.mxu0 0
    %229 = vmatpush2.bf16.msra.mxu0 0
    %230 = vmatprep.mubr.bf16.mxu0 0
    %231 = vmatmul.mubr.bf16.gmra.mxu0 %v196
    %v232 = vpop.f32.mrf.mxu0
    %v233 = vadd.f32 %v173, %v232
    %v234 = vpop.f32.mrf.mxu0
    %v235 = vadd.f32 %v177, %v234
    %v236 = vpop.f32.mrf.mxu0
    %v237 = vadd.f32 %v173, %v236
    %v238 = vpop.f32.mrf.mxu0
    %v239 = vadd.f32 %v177, %v238
    %240 = vdwg.mxu0
    %v241 = vmul.f32 %v233, 0.17677669
    %v242 = vmul.f32 %v237, 0.17677669
    %v243 = vpack.c.bf16 %v242, %v241
    %v244 = vpack.c.bf16 %v237, %v233
    %v245 = vpack.c.bf16 %v239, %v235
    %247 = vrot.lane.b32.xlu0 %v244, 64
    %v248 = vpop.permute.xlu0 %247
    %vm249 = vcmask 261120
    %v251 = vsel %vm249, %v243, 0
    %v254 = vsel %vm249, %v248, 0
    %256 = vmatprep.subr.bf16.mxu0 0
    %257 = vmatpush1.bf16.xpose.msra.mxu0 0
    %258 = vmatprep.subr.bf16.mxu0 0
    %259 = vmatpush1.bf16.xpose.msra.mxu0 0
    %260 = vmatprep.subr.bf16.mxu0 0
    %261 = vmatpush1.bf16.xpose.msra.mxu0 0
    %262 = vmatprep.subr.bf16.mxu0 0
    %263 = vmatpush1.bf16.xpose.msra.mxu0 0
    %264 = vmatprep.subr.bf16.mxu0 0
    %265 = vmatpush1.bf16.xpose.msra.mxu0 0
    %266 = vmatprep.subr.bf16.mxu0 0
    %267 = vmatpush1.bf16.xpose.msra.mxu0 0
    %268 = vmatprep.subr.bf16.mxu0 0
    %269 = vmatpush1.bf16.xpose.msra.mxu0 0
    %270 = vmatprep.subr.bf16.mxu0 0
    %271 = vmatpush1.bf16.xpose.msra.mxu0 %v254
    %272 = vmatprep.subr.bf16.mxu0 0
    %273 = vmatpush2.bf16.xpose.msra.mxu0 0
    %274 = vmatprep.subr.bf16.mxu0 0
    %275 = vmatpush2.bf16.xpose.msra.mxu0 0
    %276 = vmatprep.subr.bf16.mxu0 0
    %277 = vmatpush2.bf16.xpose.msra.mxu0 0
    %278 = vmatprep.subr.bf16.mxu0 0
    %279 = vmatpush2.bf16.xpose.msra.mxu0 0
    %280 = vmatprep.subr.bf16.mxu0 0
    %281 = vmatpush2.bf16.xpose.msra.mxu0 0
    %282 = vmatprep.subr.bf16.mxu0 0
    %283 = vmatpush2.bf16.xpose.msra.mxu0 0
    %284 = vmatprep.subr.bf16.mxu0 0
    %285 = vmatpush2.bf16.xpose.msra.mxu0 0
    %286 = vmatprep.subr.bf16.mxu0 0
    %287 = vmatpush2.bf16.xpose.msra.mxu0 0
    %288 = vmatprep.mubr.bf16.mxu0 0
    %289 = vmatmul.mubr.bf16.gmra.mxu0 %v251
    %v290 = vpop.f32.mrf.mxu0
    %v291 = vadd.f32 %v151, %v290
    %v292 = vpop.f32.mrf.mxu0
    %v293 = vpop.f32.mrf.mxu0
    %v294 = vadd.f32 %v152, %v293
    %v295 = vpop.f32.mrf.mxu0
    %296 = vdwg.mxu0
    %v297 = vsel %vm153, %v291, -inf
    %298 = vmax.xlane.f32.xlu0 %v297
    %v299 = vpop.xlane.xlu0 %298
    %v300 = vsel %vm153, %v294, -inf
    %301 = vmax.xlane.f32.xlu0 %v300
    %v302 = vpop.xlane.xlu0 %301
    %v303 = vsel %vm160, %v299, 0.0
    %v304 = vsel %vm161, %v302, 0.0
    %v305 = vsub.f32 %v291, %v303
    %v306 = vsub.f32 %v294, %v304
    %v307 = vmul.f32 %v305, 1.442695
    %v308 = vpow.pop %v307
    %v309 = vmul.f32 %v306, 1.442695
    %v310 = vpow.pop %v309
    %v311 = vmul.f32 %v147, %v308
    %v312 = vmul.f32 %v148, %v310
    %v313 = vsel %vm153, %v311, 0.0
    %314 = vadd.xlane.f32.xlu0 %v313
    %v315 = vpop.xlane.xlu0 %314
    %v316 = vsel %vm153, %v312, 0.0
    %317 = vadd.xlane.f32.xlu0 %v316
    %v318 = vpop.xlane.xlu0 %317
    %v319 = vmax.f32 %v315, 1e-30
    %v320 = vmax.f32 %v318, 1e-30
    %v321 = vrcp.pop %v319
    %v322 = vrcp.pop %v320
    %v323 = vmul.f32 %v311, %v321
    %v324 = vmul.f32 %v312, %v322
    %v325 = vpack.c.bf16 %v324, %v323
    %327 = vrot.lane.b32.xlu0 %v243, 96
    %v328 = vpop.permute.xlu0 %327
    %329 = vrot.lane.b32.xlu0 %v244, 32
    %v330 = vpop.permute.xlu0 %329
    %v332 = vsel %vm249, %v328, 0
    %v335 = vsel %vm249, %v330, 0
    %337 = vmatprep.subr.bf16.mxu0 0
    %338 = vmatpush1.bf16.xpose.msra.mxu0 0
    %339 = vmatprep.subr.bf16.mxu0 0
    %340 = vmatpush1.bf16.xpose.msra.mxu0 0
    %341 = vmatprep.subr.bf16.mxu0 0
    %342 = vmatpush1.bf16.xpose.msra.mxu0 0
    %343 = vmatprep.subr.bf16.mxu0 0
    %344 = vmatpush1.bf16.xpose.msra.mxu0 0
    %345 = vmatprep.subr.bf16.mxu0 0
    %346 = vmatpush1.bf16.xpose.msra.mxu0 0
    %347 = vmatprep.subr.bf16.mxu0 0
    %348 = vmatpush1.bf16.xpose.msra.mxu0 0
    %349 = vmatprep.subr.bf16.mxu0 0
    %350 = vmatpush1.bf16.xpose.msra.mxu0 0
    %351 = vmatprep.subr.bf16.mxu0 0
    %352 = vmatpush1.bf16.xpose.msra.mxu0 %v335
    %353 = vmatprep.subr.bf16.mxu0 0
    %354 = vmatpush2.bf16.xpose.msra.mxu0 0
    %355 = vmatprep.subr.bf16.mxu0 0
    %356 = vmatpush2.bf16.xpose.msra.mxu0 0
    %357 = vmatprep.subr.bf16.mxu0 0
    %358 = vmatpush2.bf16.xpose.msra.mxu0 0
    %359 = vmatprep.subr.bf16.mxu0 0
    %360 = vmatpush2.bf16.xpose.msra.mxu0 0
    %361 = vmatprep.subr.bf16.mxu0 0
    %362 = vmatpush2.bf16.xpose.msra.mxu0 0
    %363 = vmatprep.subr.bf16.mxu0 0
    %364 = vmatpush2.bf16.xpose.msra.mxu0 0
    %365 = vmatprep.subr.bf16.mxu0 0
    %366 = vmatpush2.bf16.xpose.msra.mxu0 0
    %367 = vmatprep.subr.bf16.mxu0 0
    %368 = vmatpush2.bf16.xpose.msra.mxu0 0
    %369 = vmatprep.mubr.bf16.mxu0 0
    %370 = vmatmul.mubr.bf16.gmra.mxu0 %v332
    %v371 = vpop.f32.mrf.mxu0
    %v372 = vadd.f32 %v151, %v371
    %v373 = vpop.f32.mrf.mxu0
    %v374 = vpop.f32.mrf.mxu0
    %v375 = vadd.f32 %v152, %v374
    %v376 = vpop.f32.mrf.mxu0
    %377 = vdwg.mxu0
    %v378 = vsel %vm153, %v372, -inf
    %379 = vmax.xlane.f32.xlu0 %v378
    %v380 = vpop.xlane.xlu0 %379
    %v381 = vsel %vm153, %v375, -inf
    %382 = vmax.xlane.f32.xlu0 %v381
    %v383 = vpop.xlane.xlu0 %382
    %v384 = vsel %vm160, %v380, 0.0
    %v385 = vsel %vm161, %v383, 0.0
    %v386 = vsub.f32 %v372, %v384
    %v387 = vsub.f32 %v375, %v385
    %v388 = vmul.f32 %v386, 1.442695
    %v389 = vpow.pop %v388
    %v390 = vmul.f32 %v387, 1.442695
    %v391 = vpow.pop %v390
    %v392 = vmul.f32 %v147, %v389
    %v393 = vmul.f32 %v148, %v391
    %v394 = vsel %vm153, %v392, 0.0
    %395 = vadd.xlane.f32.xlu0 %v394
    %v396 = vpop.xlane.xlu0 %395
    %v397 = vsel %vm153, %v393, 0.0
    %398 = vadd.xlane.f32.xlu0 %v397
    %v399 = vpop.xlane.xlu0 %398
    %v400 = vmax.f32 %v396, 1e-30
    %v401 = vmax.f32 %v399, 1e-30
    %v402 = vrcp.pop %v400
    %v403 = vrcp.pop %v401
    %v404 = vmul.f32 %v392, %v402
    %v405 = vmul.f32 %v393, %v403
    %v406 = vpack.c.bf16 %v405, %v404
    %408 = vrot.lane.b32.xlu0 %v245, 96
    %v409 = vpop.permute.xlu0 %408
    %v412 = vsel %vm153, %v406, 0
    %414 = vmatprep.subr.bf16.mxu0 0
    %415 = vmatpush1.bf16.msra.mxu0 0
    %416 = vmatprep.subr.bf16.mxu0 0
    %417 = vmatpush1.bf16.msra.mxu0 0
    %418 = vmatprep.subr.bf16.mxu0 0
    %419 = vmatpush1.bf16.msra.mxu0 0
    %420 = vmatprep.subr.bf16.mxu0 0
    %421 = vmatpush1.bf16.msra.mxu0 0
    %422 = vmatprep.subr.bf16.mxu0 0
    %423 = vmatpush1.bf16.msra.mxu0 0
    %424 = vmatprep.subr.bf16.mxu0 0
    %425 = vmatpush1.bf16.msra.mxu0 0
    %426 = vmatprep.subr.bf16.mxu0 0
    %427 = vmatpush1.bf16.msra.mxu0 0
    %428 = vmatprep.subr.bf16.mxu0 0
    %429 = vmatpush1.bf16.msra.mxu0 %v409
    %430 = vmatprep.subr.bf16.mxu0 0
    %431 = vmatpush2.bf16.msra.mxu0 0
    %432 = vmatprep.subr.bf16.mxu0 0
    %433 = vmatpush2.bf16.msra.mxu0 0
    %434 = vmatprep.subr.bf16.mxu0 0
    %435 = vmatpush2.bf16.msra.mxu0 0
    %436 = vmatprep.subr.bf16.mxu0 0
    %437 = vmatpush2.bf16.msra.mxu0 0
    %438 = vmatprep.subr.bf16.mxu0 0
    %439 = vmatpush2.bf16.msra.mxu0 0
    %440 = vmatprep.subr.bf16.mxu0 0
    %441 = vmatpush2.bf16.msra.mxu0 0
    %442 = vmatprep.subr.bf16.mxu0 0
    %443 = vmatpush2.bf16.msra.mxu0 0
    %444 = vmatprep.subr.bf16.mxu0 0
    %445 = vmatpush2.bf16.msra.mxu0 0
    %446 = vmatprep.mubr.bf16.mxu0 0
    %447 = vmatmul.mubr.bf16.gmra.mxu0 %v412
    %v448 = vpop.f32.mrf.mxu0
    %v449 = vadd.f32 0.0, %v448
    %v450 = vpop.f32.mrf.mxu0
    %v451 = vpop.f32.mrf.mxu0
    %v452 = vadd.f32 0.0, %v451
    %v453 = vpop.f32.mrf.mxu0
    %454 = vdwg.mxu0
    %v456 = vsel %vm153, %v325, 0
    %458 = vmatprep.subr.bf16.mxu0 0
    %459 = vmatpush1.bf16.msra.mxu0 0
    %460 = vmatprep.subr.bf16.mxu0 0
    %461 = vmatpush1.bf16.msra.mxu0 0
    %462 = vmatprep.subr.bf16.mxu0 0
    %463 = vmatpush1.bf16.msra.mxu0 0
    %464 = vmatprep.subr.bf16.mxu0 0
    %465 = vmatpush1.bf16.msra.mxu0 0
    %466 = vmatprep.subr.bf16.mxu0 0
    %467 = vmatpush1.bf16.msra.mxu0 0
    %468 = vmatprep.subr.bf16.mxu0 0
    %469 = vmatpush1.bf16.msra.mxu0 0
    %470 = vmatprep.subr.bf16.mxu0 0
    %471 = vmatpush1.bf16.msra.mxu0 0
    %472 = vmatprep.subr.bf16.mxu0 0
    %473 = vmatpush1.bf16.msra.mxu0 %v245
    %474 = vmatprep.subr.bf16.mxu0 0
    %475 = vmatpush2.bf16.msra.mxu0 0
    %476 = vmatprep.subr.bf16.mxu0 0
    %477 = vmatpush2.bf16.msra.mxu0 0
    %478 = vmatprep.subr.bf16.mxu0 0
    %479 = vmatpush2.bf16.msra.mxu0 0
    %480 = vmatprep.subr.bf16.mxu0 0
    %481 = vmatpush2.bf16.msra.mxu0 0
    %482 = vmatprep.subr.bf16.mxu0 0
    %483 = vmatpush2.bf16.msra.mxu0 0
    %484 = vmatprep.subr.bf16.mxu0 0
    %485 = vmatpush2.bf16.msra.mxu0 0
    %486 = vmatprep.subr.bf16.mxu0 0
    %487 = vmatpush2.bf16.msra.mxu0 0
    %488 = vmatprep.subr.bf16.mxu0 0
    %489 = vmatpush2.bf16.msra.mxu0 0
    %490 = vmatprep.mubr.bf16.mxu0 0
    %491 = vmatmul.mubr.bf16.gmra.mxu0 %v456
    %v492 = vpop.f32.mrf.mxu0
    %v493 = vadd.f32 %v449, %v492
    %v494 = vpop.f32.mrf.mxu0
    %v495 = vpop.f32.mrf.mxu0
    %v496 = vadd.f32 %v452, %v495
    %v497 = vpop.f32.mrf.mxu0
    %498 = vdwg.mxu0
    %v499 = vmul.f32 %v493, 0.5
    %v500 = vmul.f32 %v496, 0.5
    %503 = vrot.lane.b32.xlu0 %v235, 64
    %v504 = vpop.permute.xlu0 %503
    %505 = vrot.lane.b32.xlu0 %v239, 64
    %v506 = vpop.permute.xlu0 %505
    %v509 = vadd.f32 %v499, %v504
    %v510 = vadd.f32 %v500, %v506
    %v511 = vmax.f32 %v509, 0.0
    %v512 = vmax.f32 %v510, 0.0
    %v513 = vsel %vm249, %v511, 0.0
    %514 = vadd.xlane.f32.xlu0 %v513
    %v515 = vpop.xlane.xlu0 %514
    %v516 = vsel %vm249, %v512, 0.0
    %517 = vadd.xlane.f32.xlu0 %v516
    %v518 = vpop.xlane.xlu0 %517
    %v519 = vrcp.pop 32.0
    %v520 = vmul.f32 %v515, %v519
    %v521 = vmul.f32 %v518, %v519
    %v522 = vsub.f32 %v511, %v520
    %v523 = vsub.f32 %v512, %v521
    %v524 = vmul.f32 %v522, %v522
    %v525 = vmul.f32 %v523, %v523
    %v526 = vsel %vm249, %v524, 0.0
    %527 = vadd.xlane.f32.xlu0 %v526
    %v528 = vpop.xlane.xlu0 %527
    %v529 = vsel %vm249, %v525, 0.0
    %530 = vadd.xlane.f32.xlu0 %v529
    %v531 = vpop.xlane.xlu0 %530
    %v532 = vmul.f32 %v528, %v519
    %v533 = vmul.f32 %v531, %v519
    %v534 = vadd.f32 %v532, 1e-05
    %v535 = vadd.f32 %v533, 1e-05
    %v536 = vrsqrt.pop %v534
    %v537 = vrsqrt.pop %v535
    %v538 = vmul.f32 %v522, %v536
    %v539 = vmul.f32 %v523, %v537
    %v541 = vlaneseq
    %v542 = vshrl.u32 %v541, 7
    %v543 = vsub.s32 0, %v542
    %v544 = vrot.slane %v167, %v543
    %v546 = vmul.f32 %v538, %v544
    %v547 = vmul.f32 %v539, %v544
    %v549 = vlaneseq
    %v550 = vshrl.u32 %v549, 7
    %v551 = vsub.s32 0, %v550
    %v552 = vrot.slane %v168, %v551
    %v554 = vadd.f32 %v546, %v552
    %v555 = vadd.f32 %v547, %v552
    %v556 = vld [vmem:[%s10] sm:$0xff]
    %v557 = vld [vmem:[%s10 + $0x8] sm:$0xff]
    %v558 = vld [vmem:[%s10 + $0x10] sm:$0xff]
    %v559 = vld [vmem:[%s10 + $0x18] sm:$0xff]
    %v560 = vld [vmem:[%s11] sm:$0x3]
    %v561 = vld [vmem:[%s12] sm:$0x1]
    %v562 = vld [vmem:[%s13] sm:$0x1]
    %v563 = vpack.c.bf16 %v555, %v554
    %v565 = vlaneseq
    %v566 = vshrl.u32 %v565, 7
    %v567 = vsub.s32 0, %v566
    %v568 = vrot.slane %v560, %v567
    %v569 = vlaneseq
    %v570 = vshrl.u32 %v569, 7
    %v571 = vsub.s32 1, %v570
    %v572 = vrot.slane %v560, %v571
    %v579 = vunpack.c.l.b16 %v556
    %v580 = vunpack.c.h.b16 %v556
    %v581 = vunpack.c.l.b16 %v557
    %v582 = vunpack.c.h.b16 %v557
    %v583 = vunpack.c.l.b16 %v558
    %v584 = vunpack.c.h.b16 %v558
    %v585 = vunpack.c.l.b16 %v559
    %v586 = vunpack.c.h.b16 %v559
    %v587 = vpack.c.b16 %v581, %v579
    %v588 = vpack.c.b16 %v582, %v580
    %v589 = vpack.c.b16 %v585, %v583
    %v590 = vpack.c.b16 %v586, %v584
    %v596 = vsel %vm249, %v563, 0
    %598 = vmatprep.subr.bf16.mxu0 0
    %599 = vmatpush1.bf16.msra.mxu0 0
    %600 = vmatprep.subr.bf16.mxu0 0
    %601 = vmatpush1.bf16.msra.mxu0 0
    %602 = vmatprep.subr.bf16.mxu0 0
    %603 = vmatpush1.bf16.msra.mxu0 0
    %604 = vmatprep.subr.bf16.mxu0 0
    %605 = vmatpush1.bf16.msra.mxu0 0
    %606 = vmatprep.subr.bf16.mxu0 0
    %607 = vmatpush1.bf16.msra.mxu0 0
    %608 = vmatprep.subr.bf16.mxu0 0
    %609 = vmatpush1.bf16.msra.mxu0 0
    %610 = vmatprep.subr.bf16.mxu0 %v590
    %611 = vmatpush1.bf16.msra.mxu0 %v589
    %612 = vmatprep.subr.bf16.mxu0 %v588
    %613 = vmatpush1.bf16.msra.mxu0 %v587
    %614 = vmatprep.subr.bf16.mxu0 0
    %615 = vmatpush2.bf16.msra.mxu0 0
    %616 = vmatprep.subr.bf16.mxu0 0
    %617 = vmatpush2.bf16.msra.mxu0 0
    %618 = vmatprep.subr.bf16.mxu0 0
    %619 = vmatpush2.bf16.msra.mxu0 0
    %620 = vmatprep.subr.bf16.mxu0 0
    %621 = vmatpush2.bf16.msra.mxu0 0
    %622 = vmatprep.subr.bf16.mxu0 0
    %623 = vmatpush2.bf16.msra.mxu0 0
    %624 = vmatprep.subr.bf16.mxu0 0
    %625 = vmatpush2.bf16.msra.mxu0 0
    %626 = vmatprep.subr.bf16.mxu0 0
    %627 = vmatpush2.bf16.msra.mxu0 0
    %628 = vmatprep.subr.bf16.mxu0 0
    %629 = vmatpush2.bf16.msra.mxu0 0
    %630 = vmatprep.mubr.bf16.mxu0 0
    %631 = vmatmul.mubr.bf16.gmra.mxu0 %v596
    %v632 = vpop.f32.mrf.mxu0
    %v633 = vadd.f32 %v568, %v632
    %v634 = vpop.f32.mrf.mxu0
    %v635 = vadd.f32 %v572, %v634
    %v636 = vpop.f32.mrf.mxu0
    %v637 = vadd.f32 %v568, %v636
    %v638 = vpop.f32.mrf.mxu0
    %v639 = vadd.f32 %v572, %v638
    %640 = vdwg.mxu0
    %v641 = vmul.f32 %v633, 0.17677669
    %v642 = vmul.f32 %v637, 0.17677669
    %v643 = vpack.c.bf16 %v642, %v641
    %v644 = vpack.c.bf16 %v637, %v633
    %v645 = vpack.c.bf16 %v639, %v635
    %647 = vrot.lane.b32.xlu0 %v644, 64
    %v648 = vpop.permute.xlu0 %647
    %v650 = vsel %vm249, %v643, 0
    %v653 = vsel %vm249, %v648, 0
    %655 = vmatprep.subr.bf16.mxu0 0
    %656 = vmatpush1.bf16.xpose.msra.mxu0 0
    %657 = vmatprep.subr.bf16.mxu0 0
    %658 = vmatpush1.bf16.xpose.msra.mxu0 0
    %659 = vmatprep.subr.bf16.mxu0 0
    %660 = vmatpush1.bf16.xpose.msra.mxu0 0
    %661 = vmatprep.subr.bf16.mxu0 0
    %662 = vmatpush1.bf16.xpose.msra.mxu0 0
    %663 = vmatprep.subr.bf16.mxu0 0
    %664 = vmatpush1.bf16.xpose.msra.mxu0 0
    %665 = vmatprep.subr.bf16.mxu0 0
    %666 = vmatpush1.bf16.xpose.msra.mxu0 0
    %667 = vmatprep.subr.bf16.mxu0 0
    %668 = vmatpush1.bf16.xpose.msra.mxu0 0
    %669 = vmatprep.subr.bf16.mxu0 0
    %670 = vmatpush1.bf16.xpose.msra.mxu0 %v653
    %671 = vmatprep.subr.bf16.mxu0 0
    %672 = vmatpush2.bf16.xpose.msra.mxu0 0
    %673 = vmatprep.subr.bf16.mxu0 0
    %674 = vmatpush2.bf16.xpose.msra.mxu0 0
    %675 = vmatprep.subr.bf16.mxu0 0
    %676 = vmatpush2.bf16.xpose.msra.mxu0 0
    %677 = vmatprep.subr.bf16.mxu0 0
    %678 = vmatpush2.bf16.xpose.msra.mxu0 0
    %679 = vmatprep.subr.bf16.mxu0 0
    %680 = vmatpush2.bf16.xpose.msra.mxu0 0
    %681 = vmatprep.subr.bf16.mxu0 0
    %682 = vmatpush2.bf16.xpose.msra.mxu0 0
    %683 = vmatprep.subr.bf16.mxu0 0
    %684 = vmatpush2.bf16.xpose.msra.mxu0 0
    %685 = vmatprep.subr.bf16.mxu0 0
    %686 = vmatpush2.bf16.xpose.msra.mxu0 0
    %687 = vmatprep.mubr.bf16.mxu0 0
    %688 = vmatmul.mubr.bf16.gmra.mxu0 %v650
    %v689 = vpop.f32.mrf.mxu0
    %v690 = vadd.f32 %v151, %v689
    %v691 = vpop.f32.mrf.mxu0
    %v692 = vpop.f32.mrf.mxu0
    %v693 = vadd.f32 %v152, %v692
    %v694 = vpop.f32.mrf.mxu0
    %695 = vdwg.mxu0
    %v696 = vsel %vm153, %v690, -inf
    %697 = vmax.xlane.f32.xlu0 %v696
    %v698 = vpop.xlane.xlu0 %697
    %v699 = vsel %vm153, %v693, -inf
    %700 = vmax.xlane.f32.xlu0 %v699
    %v701 = vpop.xlane.xlu0 %700
    %v702 = vsel %vm160, %v698, 0.0
    %v703 = vsel %vm161, %v701, 0.0
    %v704 = vsub.f32 %v690, %v702
    %v705 = vsub.f32 %v693, %v703
    %v706 = vmul.f32 %v704, 1.442695
    %v707 = vpow.pop %v706
    %v708 = vmul.f32 %v705, 1.442695
    %v709 = vpow.pop %v708
    %v710 = vmul.f32 %v147, %v707
    %v711 = vmul.f32 %v148, %v709
    %v712 = vsel %vm153, %v710, 0.0
    %713 = vadd.xlane.f32.xlu0 %v712
    %v714 = vpop.xlane.xlu0 %713
    %v715 = vsel %vm153, %v711, 0.0
    %716 = vadd.xlane.f32.xlu0 %v715
    %v717 = vpop.xlane.xlu0 %716
    %v718 = vmax.f32 %v714, 1e-30
    %v719 = vmax.f32 %v717, 1e-30
    %v720 = vrcp.pop %v718
    %v721 = vrcp.pop %v719
    %v722 = vmul.f32 %v710, %v720
    %v723 = vmul.f32 %v711, %v721
    %v724 = vpack.c.bf16 %v723, %v722
    %726 = vrot.lane.b32.xlu0 %v643, 96
    %v727 = vpop.permute.xlu0 %726
    %728 = vrot.lane.b32.xlu0 %v644, 32
    %v729 = vpop.permute.xlu0 %728
    %v731 = vsel %vm249, %v727, 0
    %v734 = vsel %vm249, %v729, 0
    %736 = vmatprep.subr.bf16.mxu0 0
    %737 = vmatpush1.bf16.xpose.msra.mxu0 0
    %738 = vmatprep.subr.bf16.mxu0 0
    %739 = vmatpush1.bf16.xpose.msra.mxu0 0
    %740 = vmatprep.subr.bf16.mxu0 0
    %741 = vmatpush1.bf16.xpose.msra.mxu0 0
    %742 = vmatprep.subr.bf16.mxu0 0
    %743 = vmatpush1.bf16.xpose.msra.mxu0 0
    %744 = vmatprep.subr.bf16.mxu0 0
    %745 = vmatpush1.bf16.xpose.msra.mxu0 0
    %746 = vmatprep.subr.bf16.mxu0 0
    %747 = vmatpush1.bf16.xpose.msra.mxu0 0
    %748 = vmatprep.subr.bf16.mxu0 0
    %749 = vmatpush1.bf16.xpose.msra.mxu0 0
    %750 = vmatprep.subr.bf16.mxu0 0
    %751 = vmatpush1.bf16.xpose.msra.mxu0 %v734
    %752 = vmatprep.subr.bf16.mxu0 0
    %753 = vmatpush2.bf16.xpose.msra.mxu0 0
    %754 = vmatprep.subr.bf16.mxu0 0
    %755 = vmatpush2.bf16.xpose.msra.mxu0 0
    %756 = vmatprep.subr.bf16.mxu0 0
    %757 = vmatpush2.bf16.xpose.msra.mxu0 0
    %758 = vmatprep.subr.bf16.mxu0 0
    %759 = vmatpush2.bf16.xpose.msra.mxu0 0
    %760 = vmatprep.subr.bf16.mxu0 0
    %761 = vmatpush2.bf16.xpose.msra.mxu0 0
    %762 = vmatprep.subr.bf16.mxu0 0
    %763 = vmatpush2.bf16.xpose.msra.mxu0 0
    %764 = vmatprep.subr.bf16.mxu0 0
    %765 = vmatpush2.bf16.xpose.msra.mxu0 0
    %766 = vmatprep.subr.bf16.mxu0 0
    %767 = vmatpush2.bf16.xpose.msra.mxu0 0
    %768 = vmatprep.mubr.bf16.mxu0 0
    %769 = vmatmul.mubr.bf16.gmra.mxu0 %v731
    %v770 = vpop.f32.mrf.mxu0
    %v771 = vadd.f32 %v151, %v770
    %v772 = vpop.f32.mrf.mxu0
    %v773 = vpop.f32.mrf.mxu0
    %v774 = vadd.f32 %v152, %v773
    %v775 = vpop.f32.mrf.mxu0
    %776 = vdwg.mxu0
    %v777 = vsel %vm153, %v771, -inf
    %778 = vmax.xlane.f32.xlu0 %v777
    %v779 = vpop.xlane.xlu0 %778
    %v780 = vsel %vm153, %v774, -inf
    %781 = vmax.xlane.f32.xlu0 %v780
    %v782 = vpop.xlane.xlu0 %781
    %v783 = vsel %vm160, %v779, 0.0
    %v784 = vsel %vm161, %v782, 0.0
    %v785 = vsub.f32 %v771, %v783
    %v786 = vsub.f32 %v774, %v784
    %v787 = vmul.f32 %v785, 1.442695
    %v788 = vpow.pop %v787
    %v789 = vmul.f32 %v786, 1.442695
    %v790 = vpow.pop %v789
    %v791 = vmul.f32 %v147, %v788
    %v792 = vmul.f32 %v148, %v790
    %v793 = vsel %vm153, %v791, 0.0
    %794 = vadd.xlane.f32.xlu0 %v793
    %v795 = vpop.xlane.xlu0 %794
    %v796 = vsel %vm153, %v792, 0.0
    %797 = vadd.xlane.f32.xlu0 %v796
    %v798 = vpop.xlane.xlu0 %797
    %v799 = vmax.f32 %v795, 1e-30
    %v800 = vmax.f32 %v798, 1e-30
    %v801 = vrcp.pop %v799
    %v802 = vrcp.pop %v800
    %v803 = vmul.f32 %v791, %v801
    %v804 = vmul.f32 %v792, %v802
    %v805 = vpack.c.bf16 %v804, %v803
    %807 = vrot.lane.b32.xlu0 %v645, 96
    %v808 = vpop.permute.xlu0 %807
    %v811 = vsel %vm153, %v805, 0
    %813 = vmatprep.subr.bf16.mxu0 0
    %814 = vmatpush1.bf16.msra.mxu0 0
    %815 = vmatprep.subr.bf16.mxu0 0
    %816 = vmatpush1.bf16.msra.mxu0 0
    %817 = vmatprep.subr.bf16.mxu0 0
    %818 = vmatpush1.bf16.msra.mxu0 0
    %819 = vmatprep.subr.bf16.mxu0 0
    %820 = vmatpush1.bf16.msra.mxu0 0
    %821 = vmatprep.subr.bf16.mxu0 0
    %822 = vmatpush1.bf16.msra.mxu0 0
    %823 = vmatprep.subr.bf16.mxu0 0
    %824 = vmatpush1.bf16.msra.mxu0 0
    %825 = vmatprep.subr.bf16.mxu0 0
    %826 = vmatpush1.bf16.msra.mxu0 0
    %827 = vmatprep.subr.bf16.mxu0 0
    %828 = vmatpush1.bf16.msra.mxu0 %v808
    %829 = vmatprep.subr.bf16.mxu0 0
    %830 = vmatpush2.bf16.msra.mxu0 0
    %831 = vmatprep.subr.bf16.mxu0 0
    %832 = vmatpush2.bf16.msra.mxu0 0
    %833 = vmatprep.subr.bf16.mxu0 0
    %834 = vmatpush2.bf16.msra.mxu0 0
    %835 = vmatprep.subr.bf16.mxu0 0
    %836 = vmatpush2.bf16.msra.mxu0 0
    %837 = vmatprep.subr.bf16.mxu0 0
    %838 = vmatpush2.bf16.msra.mxu0 0
    %839 = vmatprep.subr.bf16.mxu0 0
    %840 = vmatpush2.bf16.msra.mxu0 0
    %841 = vmatprep.subr.bf16.mxu0 0
    %842 = vmatpush2.bf16.msra.mxu0 0
    %843 = vmatprep.subr.bf16.mxu0 0
    %844 = vmatpush2.bf16.msra.mxu0 0
    %845 = vmatprep.mubr.bf16.mxu0 0
    %846 = vmatmul.mubr.bf16.gmra.mxu0 %v811
    %v847 = vpop.f32.mrf.mxu0
    %v848 = vadd.f32 0.0, %v847
    %v849 = vpop.f32.mrf.mxu0
    %v850 = vpop.f32.mrf.mxu0
    %v851 = vadd.f32 0.0, %v850
    %v852 = vpop.f32.mrf.mxu0
    %853 = vdwg.mxu0
    %v855 = vsel %vm153, %v724, 0
    %857 = vmatprep.subr.bf16.mxu0 0
    %858 = vmatpush1.bf16.msra.mxu0 0
    %859 = vmatprep.subr.bf16.mxu0 0
    %860 = vmatpush1.bf16.msra.mxu0 0
    %861 = vmatprep.subr.bf16.mxu0 0
    %862 = vmatpush1.bf16.msra.mxu0 0
    %863 = vmatprep.subr.bf16.mxu0 0
    %864 = vmatpush1.bf16.msra.mxu0 0
    %865 = vmatprep.subr.bf16.mxu0 0
    %866 = vmatpush1.bf16.msra.mxu0 0
    %867 = vmatprep.subr.bf16.mxu0 0
    %868 = vmatpush1.bf16.msra.mxu0 0
    %869 = vmatprep.subr.bf16.mxu0 0
    %870 = vmatpush1.bf16.msra.mxu0 0
    %871 = vmatprep.subr.bf16.mxu0 0
    %872 = vmatpush1.bf16.msra.mxu0 %v645
    %873 = vmatprep.subr.bf16.mxu0 0
    %874 = vmatpush2.bf16.msra.mxu0 0
    %875 = vmatprep.subr.bf16.mxu0 0
    %876 = vmatpush2.bf16.msra.mxu0 0
    %877 = vmatprep.subr.bf16.mxu0 0
    %878 = vmatpush2.bf16.msra.mxu0 0
    %879 = vmatprep.subr.bf16.mxu0 0
    %880 = vmatpush2.bf16.msra.mxu0 0
    %881 = vmatprep.subr.bf16.mxu0 0
    %882 = vmatpush2.bf16.msra.mxu0 0
    %883 = vmatprep.subr.bf16.mxu0 0
    %884 = vmatpush2.bf16.msra.mxu0 0
    %885 = vmatprep.subr.bf16.mxu0 0
    %886 = vmatpush2.bf16.msra.mxu0 0
    %887 = vmatprep.subr.bf16.mxu0 0
    %888 = vmatpush2.bf16.msra.mxu0 0
    %889 = vmatprep.mubr.bf16.mxu0 0
    %890 = vmatmul.mubr.bf16.gmra.mxu0 %v855
    %v891 = vpop.f32.mrf.mxu0
    %v892 = vadd.f32 %v848, %v891
    %v893 = vpop.f32.mrf.mxu0
    %v894 = vpop.f32.mrf.mxu0
    %v895 = vadd.f32 %v851, %v894
    %v896 = vpop.f32.mrf.mxu0
    %897 = vdwg.mxu0
    %v898 = vmul.f32 %v892, 0.5
    %v899 = vmul.f32 %v895, 0.5
    %902 = vrot.lane.b32.xlu0 %v635, 64
    %v903 = vpop.permute.xlu0 %902
    %904 = vrot.lane.b32.xlu0 %v639, 64
    %v905 = vpop.permute.xlu0 %904
    %v908 = vadd.f32 %v898, %v903
    %v909 = vadd.f32 %v899, %v905
    %v910 = vmax.f32 %v908, 0.0
    %v911 = vmax.f32 %v909, 0.0
    %v912 = vsel %vm249, %v910, 0.0
    %913 = vadd.xlane.f32.xlu0 %v912
    %v914 = vpop.xlane.xlu0 %913
    %v915 = vsel %vm249, %v911, 0.0
    %916 = vadd.xlane.f32.xlu0 %v915
    %v917 = vpop.xlane.xlu0 %916
    %v918 = vmul.f32 %v914, %v519
    %v919 = vmul.f32 %v917, %v519
    %v920 = vsub.f32 %v910, %v918
    %v921 = vsub.f32 %v911, %v919
    %v922 = vmul.f32 %v920, %v920
    %v923 = vmul.f32 %v921, %v921
    %v924 = vsel %vm249, %v922, 0.0
    %925 = vadd.xlane.f32.xlu0 %v924
    %v926 = vpop.xlane.xlu0 %925
    %v927 = vsel %vm249, %v923, 0.0
    %928 = vadd.xlane.f32.xlu0 %v927
    %v929 = vpop.xlane.xlu0 %928
    %v930 = vmul.f32 %v926, %v519
    %v931 = vmul.f32 %v929, %v519
    %v932 = vadd.f32 %v930, 1e-05
    %v933 = vadd.f32 %v931, 1e-05
    %v934 = vrsqrt.pop %v932
    %v935 = vrsqrt.pop %v933
    %v936 = vmul.f32 %v920, %v934
    %v937 = vmul.f32 %v921, %v935
    %v939 = vlaneseq
    %v940 = vshrl.u32 %v939, 7
    %v941 = vsub.s32 0, %v940
    %v942 = vrot.slane %v561, %v941
    %v944 = vmul.f32 %v936, %v942
    %v945 = vmul.f32 %v937, %v942
    %v947 = vlaneseq
    %v948 = vshrl.u32 %v947, 7
    %v949 = vsub.s32 0, %v948
    %v950 = vrot.slane %v562, %v949
    %v952 = vadd.f32 %v944, %v950
    %v953 = vadd.f32 %v945, %v950
    %v954 = vld [vmem:[#allocation13] sm:$0xff]
    %v955 = vld [vmem:[#allocation13 + $0x8] sm:$0xff]
    %v956 = vld [vmem:[#allocation13 + $0x10] sm:$0xff]
    %v957 = vld [vmem:[#allocation13 + $0x18] sm:$0xff]
    %v958 = vld [vmem:[%s15] sm:$0x3]
    %v959 = vpack.c.bf16 %v953, %v952
    %v961 = vlaneseq
    %v962 = vshrl.u32 %v961, 7
    %v963 = vsub.s32 0, %v962
    %v964 = vrot.slane %v958, %v963
    %v965 = vlaneseq
    %v966 = vshrl.u32 %v965, 7
    %v967 = vsub.s32 1, %v966
    %v968 = vrot.slane %v958, %v967
    %v975 = vunpack.c.l.b16 %v954
    %v976 = vunpack.c.h.b16 %v954
    %v977 = vunpack.c.l.b16 %v955
    %v978 = vunpack.c.h.b16 %v955
    %v979 = vunpack.c.l.b16 %v956
    %v980 = vunpack.c.h.b16 %v956
    %v981 = vunpack.c.l.b16 %v957
    %v982 = vunpack.c.h.b16 %v957
    %v983 = vpack.c.b16 %v977, %v975
    %v984 = vpack.c.b16 %v978, %v976
    %v985 = vpack.c.b16 %v981, %v979
    %v986 = vpack.c.b16 %v982, %v980
    %v992 = vsel %vm249, %v959, 0
    %994 = vmatprep.subr.bf16.mxu0 0
    %995 = vmatpush1.bf16.msra.mxu0 0
    %996 = vmatprep.subr.bf16.mxu0 0
    %997 = vmatpush1.bf16.msra.mxu0 0
    %998 = vmatprep.subr.bf16.mxu0 0
    %999 = vmatpush1.bf16.msra.mxu0 0
    %1000 = vmatprep.subr.bf16.mxu0 0
    %1001 = vmatpush1.bf16.msra.mxu0 0
    %1002 = vmatprep.subr.bf16.mxu0 0
    %1003 = vmatpush1.bf16.msra.mxu0 0
    %1004 = vmatprep.subr.bf16.mxu0 0
    %1005 = vmatpush1.bf16.msra.mxu0 0
    %1006 = vmatprep.subr.bf16.mxu0 %v986
    %1007 = vmatpush1.bf16.msra.mxu0 %v985
    %1008 = vmatprep.subr.bf16.mxu0 %v984
    %1009 = vmatpush1.bf16.msra.mxu0 %v983
    %1010 = vmatprep.subr.bf16.mxu0 0
    %1011 = vmatpush2.bf16.msra.mxu0 0
    %1012 = vmatprep.subr.bf16.mxu0 0
    %1013 = vmatpush2.bf16.msra.mxu0 0
    %1014 = vmatprep.subr.bf16.mxu0 0
    %1015 = vmatpush2.bf16.msra.mxu0 0
    %1016 = vmatprep.subr.bf16.mxu0 0
    %1017 = vmatpush2.bf16.msra.mxu0 0
    %1018 = vmatprep.subr.bf16.mxu0 0
    %1019 = vmatpush2.bf16.msra.mxu0 0
    %1020 = vmatprep.subr.bf16.mxu0 0
    %1021 = vmatpush2.bf16.msra.mxu0 0
    %1022 = vmatprep.subr.bf16.mxu0 0
    %1023 = vmatpush2.bf16.msra.mxu0 0
    %1024 = vmatprep.subr.bf16.mxu0 0
    %1025 = vmatpush2.bf16.msra.mxu0 0
    %1026 = vmatprep.mubr.bf16.mxu0 0
    %1027 = vmatmul.mubr.bf16.gmra.mxu0 %v992
    %v1028 = vpop.f32.mrf.mxu0
    %v1029 = vadd.f32 %v964, %v1028
    %v1030 = vpop.f32.mrf.mxu0
    %v1031 = vadd.f32 %v968, %v1030
    %v1032 = vpop.f32.mrf.mxu0
    %v1033 = vadd.f32 %v964, %v1032
    %v1034 = vpop.f32.mrf.mxu0
    %v1035 = vadd.f32 %v968, %v1034
    %1036 = vdwg.mxu0
    %v1037 = vmul.f32 %v1029, 0.17677669
    %v1038 = vmul.f32 %v1033, 0.17677669
    %v1039 = vpack.c.bf16 %v1038, %v1037
    %v1040 = vpack.c.bf16 %v1033, %v1029
    %v1041 = vpack.c.bf16 %v1035, %v1031
    %1043 = vrot.lane.b32.xlu0 %v1040, 64
    %v1044 = vpop.permute.xlu0 %1043
    %v1046 = vsel %vm249, %v1039, 0
    %v1049 = vsel %vm249, %v1044, 0
    %1051 = vmatprep.subr.bf16.mxu0 0
    %1052 = vmatpush1.bf16.xpose.msra.mxu0 0
    %1053 = vmatprep.subr.bf16.mxu0 0
    %1054 = vmatpush1.bf16.xpose.msra.mxu0 0
    %1055 = vmatprep.subr.bf16.mxu0 0
    %1056 = vmatpush1.bf16.xpose.msra.mxu0 0
    %1057 = vmatprep.subr.bf16.mxu0 0
    %1058 = vmatpush1.bf16.xpose.msra.mxu0 0
    %1059 = vmatprep.subr.bf16.mxu0 0
    %1060 = vmatpush1.bf16.xpose.msra.mxu0 0
    %1061 = vmatprep.subr.bf16.mxu0 0
    %1062 = vmatpush1.bf16.xpose.msra.mxu0 0
    %1063 = vmatprep.subr.bf16.mxu0 0
    %1064 = vmatpush1.bf16.xpose.msra.mxu0 0
    %1065 = vmatprep.subr.bf16.mxu0 0
    %1066 = vmatpush1.bf16.xpose.msra.mxu0 %v1049
    %1067 = vmatprep.subr.bf16.mxu0 0
    %1068 = vmatpush2.bf16.xpose.msra.mxu0 0
    %1069 = vmatprep.subr.bf16.mxu0 0
    %1070 = vmatpush2.bf16.xpose.msra.mxu0 0
    %1071 = vmatprep.subr.bf16.mxu0 0
    %1072 = vmatpush2.bf16.xpose.msra.mxu0 0
    %1073 = vmatprep.subr.bf16.mxu0 0
    %1074 = vmatpush2.bf16.xpose.msra.mxu0 0
    %1075 = vmatprep.subr.bf16.mxu0 0
    %1076 = vmatpush2.bf16.xpose.msra.mxu0 0
    %1077 = vmatprep.subr.bf16.mxu0 0
    %1078 = vmatpush2.bf16.xpose.msra.mxu0 0
    %1079 = vmatprep.subr.bf16.mxu0 0
    %1080 = vmatpush2.bf16.xpose.msra.mxu0 0
    %1081 = vmatprep.subr.bf16.mxu0 0
    %1082 = vmatpush2.bf16.xpose.msra.mxu0 0
    %1083 = vmatprep.mubr.bf16.mxu0 0
    %1084 = vmatmul.mubr.bf16.gmra.mxu0 %v1046
    %v1085 = vpop.f32.mrf.mxu0
    %v1086 = vadd.f32 %v151, %v1085
    %v1087 = vpop.f32.mrf.mxu0
    %v1088 = vpop.f32.mrf.mxu0
    %v1089 = vadd.f32 %v152, %v1088
    %v1090 = vpop.f32.mrf.mxu0
    %1091 = vdwg.mxu0
    %v1092 = vsel %vm153, %v1086, -inf
    %1093 = vmax.xlane.f32.xlu0 %v1092
    %v1094 = vpop.xlane.xlu0 %1093
    %v1095 = vsel %vm153, %v1089, -inf
    %1096 = vmax.xlane.f32.xlu0 %v1095
    %v1097 = vpop.xlane.xlu0 %1096
    %v1098 = vsel %vm160, %v1094, 0.0
    %v1099 = vsel %vm161, %v1097, 0.0
    %v1100 = vsub.f32 %v1086, %v1098
    %v1101 = vsub.f32 %v1089, %v1099
    %v1102 = vmul.f32 %v1100, 1.442695
    %v1103 = vpow.pop %v1102
    %v1104 = vmul.f32 %v1101, 1.442695
    %v1105 = vpow.pop %v1104
    %v1106 = vmul.f32 %v147, %v1103
    %v1107 = vmul.f32 %v148, %v1105
    %v1108 = vsel %vm153, %v1106, 0.0
    %1109 = vadd.xlane.f32.xlu0 %v1108
    %v1110 = vpop.xlane.xlu0 %1109
    %v1111 = vsel %vm153, %v1107, 0.0
    %1112 = vadd.xlane.f32.xlu0 %v1111
    %v1113 = vpop.xlane.xlu0 %1112
    %v1114 = vmax.f32 %v1110, 1e-30
    %v1115 = vmax.f32 %v1113, 1e-30
    %v1116 = vrcp.pop %v1114
    %v1117 = vrcp.pop %v1115
    %v1118 = vmul.f32 %v1106, %v1116
    %v1119 = vmul.f32 %v1107, %v1117
    %v1120 = vpack.c.bf16 %v1119, %v1118
    %1122 = vrot.lane.b32.xlu0 %v1039, 96
    %v1123 = vpop.permute.xlu0 %1122
    %1124 = vrot.lane.b32.xlu0 %v1040, 32
    %v1125 = vpop.permute.xlu0 %1124
    %v1127 = vsel %vm249, %v1123, 0
    %v1130 = vsel %vm249, %v1125, 0
    %1132 = vmatprep.subr.bf16.mxu0 0
    %1133 = vmatpush1.bf16.xpose.msra.mxu0 0
    %1134 = vmatprep.subr.bf16.mxu0 0
    %1135 = vmatpush1.bf16.xpose.msra.mxu0 0
    %1136 = vmatprep.subr.bf16.mxu0 0
    %1137 = vmatpush1.bf16.xpose.msra.mxu0 0
    %1138 = vmatprep.subr.bf16.mxu0 0
    %1139 = vmatpush1.bf16.xpose.msra.mxu0 0
    %1140 = vmatprep.subr.bf16.mxu0 0
    %1141 = vmatpush1.bf16.xpose.msra.mxu0 0
    %1142 = vmatprep.subr.bf16.mxu0 0
    %1143 = vmatpush1.bf16.xpose.msra.mxu0 0
    %1144 = vmatprep.subr.bf16.mxu0 0
    %1145 = vmatpush1.bf16.xpose.msra.mxu0 0
    %1146 = vmatprep.subr.bf16.mxu0 0
    %1147 = vmatpush1.bf16.xpose.msra.mxu0 %v1130
    %1148 = vmatprep.subr.bf16.mxu0 0
    %1149 = vmatpush2.bf16.xpose.msra.mxu0 0
    %1150 = vmatprep.subr.bf16.mxu0 0
    %1151 = vmatpush2.bf16.xpose.msra.mxu0 0
    %1152 = vmatprep.subr.bf16.mxu0 0
    %1153 = vmatpush2.bf16.xpose.msra.mxu0 0
    %1154 = vmatprep.subr.bf16.mxu0 0
    %1155 = vmatpush2.bf16.xpose.msra.mxu0 0
    %1156 = vmatprep.subr.bf16.mxu0 0
    %1157 = vmatpush2.bf16.xpose.msra.mxu0 0
    %1158 = vmatprep.subr.bf16.mxu0 0
    %1159 = vmatpush2.bf16.xpose.msra.mxu0 0
    %1160 = vmatprep.subr.bf16.mxu0 0
    %1161 = vmatpush2.bf16.xpose.msra.mxu0 0
    %1162 = vmatprep.subr.bf16.mxu0 0
    %1163 = vmatpush2.bf16.xpose.msra.mxu0 0
    %1164 = vmatprep.mubr.bf16.mxu0 0
    %1165 = vmatmul.mubr.bf16.gmra.mxu0 %v1127
    %v1166 = vpop.f32.mrf.mxu0
    %v1167 = vadd.f32 %v151, %v1166
    %v1168 = vpop.f32.mrf.mxu0
    %v1169 = vpop.f32.mrf.mxu0
    %v1170 = vadd.f32 %v152, %v1169
    %v1171 = vpop.f32.mrf.mxu0
    %1172 = vdwg.mxu0
    %v1173 = vsel %vm153, %v1167, -inf
    %1174 = vmax.xlane.f32.xlu0 %v1173
    %v1175 = vpop.xlane.xlu0 %1174
    %v1176 = vsel %vm153, %v1170, -inf
    %1177 = vmax.xlane.f32.xlu0 %v1176
    %v1178 = vpop.xlane.xlu0 %1177
    %v1179 = vsel %vm160, %v1175, 0.0
    %v1180 = vsel %vm161, %v1178, 0.0
    %v1181 = vsub.f32 %v1167, %v1179
    %v1182 = vsub.f32 %v1170, %v1180
    %v1183 = vmul.f32 %v1181, 1.442695
    %v1184 = vpow.pop %v1183
    %v1185 = vmul.f32 %v1182, 1.442695
    %v1186 = vpow.pop %v1185
    %v1187 = vmul.f32 %v147, %v1184
    %v1188 = vmul.f32 %v148, %v1186
    %v1189 = vsel %vm153, %v1187, 0.0
    %1190 = vadd.xlane.f32.xlu0 %v1189
    %v1191 = vpop.xlane.xlu0 %1190
    %v1192 = vsel %vm153, %v1188, 0.0
    %1193 = vadd.xlane.f32.xlu0 %v1192
    %v1194 = vpop.xlane.xlu0 %1193
    %v1195 = vmax.f32 %v1191, 1e-30
    %v1196 = vmax.f32 %v1194, 1e-30
    %v1197 = vrcp.pop %v1195
    %v1198 = vrcp.pop %v1196
    %v1199 = vmul.f32 %v1187, %v1197
    %v1200 = vmul.f32 %v1188, %v1198
    %v1201 = vpack.c.bf16 %v1200, %v1199
    %1203 = vrot.lane.b32.xlu0 %v1041, 96
    %v1204 = vpop.permute.xlu0 %1203
    %v1207 = vsel %vm153, %v1201, 0
    %1209 = vmatprep.subr.bf16.mxu0 0
    %1210 = vmatpush1.bf16.msra.mxu0 0
    %1211 = vmatprep.subr.bf16.mxu0 0
    %1212 = vmatpush1.bf16.msra.mxu0 0
    %1213 = vmatprep.subr.bf16.mxu0 0
    %1214 = vmatpush1.bf16.msra.mxu0 0
    %1215 = vmatprep.subr.bf16.mxu0 0
    %1216 = vmatpush1.bf16.msra.mxu0 0
    %1217 = vmatprep.subr.bf16.mxu0 0
    %1218 = vmatpush1.bf16.msra.mxu0 0
    %1219 = vmatprep.subr.bf16.mxu0 0
    %1220 = vmatpush1.bf16.msra.mxu0 0
    %1221 = vmatprep.subr.bf16.mxu0 0
    %1222 = vmatpush1.bf16.msra.mxu0 0
    %1223 = vmatprep.subr.bf16.mxu0 0
    %1224 = vmatpush1.bf16.msra.mxu0 %v1204
    %1225 = vmatprep.subr.bf16.mxu0 0
    %1226 = vmatpush2.bf16.msra.mxu0 0
    %1227 = vmatprep.subr.bf16.mxu0 0
    %1228 = vmatpush2.bf16.msra.mxu0 0
    %1229 = vmatprep.subr.bf16.mxu0 0
    %1230 = vmatpush2.bf16.msra.mxu0 0
    %1231 = vmatprep.subr.bf16.mxu0 0
    %1232 = vmatpush2.bf16.msra.mxu0 0
    %1233 = vmatprep.subr.bf16.mxu0 0
    %1234 = vmatpush2.bf16.msra.mxu0 0
    %1235 = vmatprep.subr.bf16.mxu0 0
    %1236 = vmatpush2.bf16.msra.mxu0 0
    %1237 = vmatprep.subr.bf16.mxu0 0
    %1238 = vmatpush2.bf16.msra.mxu0 0
    %1239 = vmatprep.subr.bf16.mxu0 0
    %1240 = vmatpush2.bf16.msra.mxu0 0
    %1241 = vmatprep.mubr.bf16.mxu0 0
    %1242 = vmatmul.mubr.bf16.gmra.mxu0 %v1207
    %v1243 = vpop.f32.mrf.mxu0
    %v1244 = vadd.f32 0.0, %v1243
    %v1245 = vpop.f32.mrf.mxu0
    %v1246 = vpop.f32.mrf.mxu0
    %v1247 = vadd.f32 0.0, %v1246
    %v1248 = vpop.f32.mrf.mxu0
    %1249 = vdwg.mxu0
    %v1251 = vsel %vm153, %v1120, 0
    %1253 = vmatprep.subr.bf16.mxu0 0
    %1254 = vmatpush1.bf16.msra.mxu0 0
    %1255 = vmatprep.subr.bf16.mxu0 0
    %1256 = vmatpush1.bf16.msra.mxu0 0
    %1257 = vmatprep.subr.bf16.mxu0 0
    %1258 = vmatpush1.bf16.msra.mxu0 0
    %1259 = vmatprep.subr.bf16.mxu0 0
    %1260 = vmatpush1.bf16.msra.mxu0 0
    %1261 = vmatprep.subr.bf16.mxu0 0
    %1262 = vmatpush1.bf16.msra.mxu0 0
    %1263 = vmatprep.subr.bf16.mxu0 0
    %1264 = vmatpush1.bf16.msra.mxu0 0
    %1265 = vmatprep.subr.bf16.mxu0 0
    %1266 = vmatpush1.bf16.msra.mxu0 0
    %1267 = vmatprep.subr.bf16.mxu0 0
    %1268 = vmatpush1.bf16.msra.mxu0 %v1041
    %1269 = vmatprep.subr.bf16.mxu0 0
    %1270 = vmatpush2.bf16.msra.mxu0 0
    %1271 = vmatprep.subr.bf16.mxu0 0
    %1272 = vmatpush2.bf16.msra.mxu0 0
    %1273 = vmatprep.subr.bf16.mxu0 0
    %1274 = vmatpush2.bf16.msra.mxu0 0
    %1275 = vmatprep.subr.bf16.mxu0 0
    %1276 = vmatpush2.bf16.msra.mxu0 0
    %1277 = vmatprep.subr.bf16.mxu0 0
    %1278 = vmatpush2.bf16.msra.mxu0 0
    %1279 = vmatprep.subr.bf16.mxu0 0
    %1280 = vmatpush2.bf16.msra.mxu0 0
    %1281 = vmatprep.subr.bf16.mxu0 0
    %1282 = vmatpush2.bf16.msra.mxu0 0
    %1283 = vmatprep.subr.bf16.mxu0 0
    %1284 = vmatpush2.bf16.msra.mxu0 0
    %1285 = vmatprep.mubr.bf16.mxu0 0
    %1286 = vmatmul.mubr.bf16.gmra.mxu0 %v1251
    %v1287 = vpop.f32.mrf.mxu0
    %v1288 = vadd.f32 %v1244, %v1287
    %v1289 = vpop.f32.mrf.mxu0
    %v1290 = vpop.f32.mrf.mxu0
    %v1291 = vadd.f32 %v1247, %v1290
    %v1292 = vpop.f32.mrf.mxu0
    %1293 = vdwg.mxu0
    %v1294 = vmul.f32 %v1288, 0.5
    %v1295 = vmul.f32 %v1291, 0.5
    %1298 = vrot.lane.b32.xlu0 %v1031, 64
    %v1299 = vpop.permute.xlu0 %1298
    %1300 = vrot.lane.b32.xlu0 %v1035, 64
    %v1301 = vpop.permute.xlu0 %1300
    %v1304 = vadd.f32 %v1294, %v1299
    %v1305 = vadd.f32 %v1295, %v1301
    %v1306 = vmax.f32 %v1304, 0.0
    %v1307 = vmax.f32 %v1305, 0.0
    %v1308 = vld [vmem:[#allocation7] sm:$0x1]
    %v1309 = vpack.c.bf16 %v1307, %v1306
    %v1311 = vsel %vm153, %v1308, 0
    %1313 = vmatprep.subr.bf16.mxu0 0
    %1314 = vmatpush1.bf16.msra.mxu0 0
    %1315 = vmatprep.subr.bf16.mxu0 0
    %1316 = vmatpush1.bf16.msra.mxu0 0
    %1317 = vmatprep.subr.bf16.mxu0 0
    %1318 = vmatpush1.bf16.msra.mxu0 0
    %1319 = vmatprep.subr.bf16.mxu0 0
    %1320 = vmatpush1.bf16.msra.mxu0 0
    %1321 = vmatprep.subr.bf16.mxu0 0
    %1322 = vmatpush1.bf16.msra.mxu0 0
    %1323 = vmatprep.subr.bf16.mxu0 0
    %1324 = vmatpush1.bf16.msra.mxu0 0
    %1325 = vmatprep.subr.bf16.mxu0 0
    %1326 = vmatpush1.bf16.msra.mxu0 0
    %1327 = vmatprep.subr.bf16.mxu0 0
    %1328 = vmatpush1.bf16.msra.mxu0 %v1309
    %1329 = vmatprep.subr.bf16.mxu0 0
    %1330 = vmatpush2.bf16.msra.mxu0 0
    %1331 = vmatprep.subr.bf16.mxu0 0
    %1332 = vmatpush2.bf16.msra.mxu0 0
    %1333 = vmatprep.subr.bf16.mxu0 0
    %1334 = vmatpush2.bf16.msra.mxu0 0
    %1335 = vmatprep.subr.bf16.mxu0 0
    %1336 = vmatpush2.bf16.msra.mxu0 0
    %1337 = vmatprep.subr.bf16.mxu0 0
    %1338 = vmatpush2.bf16.msra.mxu0 0
    %1339 = vmatprep.subr.bf16.mxu0 0
    %1340 = vmatpush2.bf16.msra.mxu0 0
    %1341 = vmatprep.subr.bf16.mxu0 0
    %1342 = vmatpush2.bf16.msra.mxu0 0
    %1343 = vmatprep.subr.bf16.mxu0 0
    %1344 = vmatpush2.bf16.msra.mxu0 0
    %1345 = vmatprep.mubr.bf16.mxu0 0
    %1346 = vmatmul.mubr.bf16.gmra.mxu0 %v1311
    %v1347 = vpop.f32.mrf.mxu0
    %v1348 = vadd.f32 0.0, %v1347
    %v1349 = vpop.f32.mrf.mxu0
    %v1350 = vpop.f32.mrf.mxu0
    %v1351 = vpop.f32.mrf.mxu0
    %1352 = vdwg.mxu0
    %v1353 = vld [vmem:[%s3] sm:$0x3]
    %1355 = vset.pattern.permute.xlu0 0
    %1356 = vperm.xlu0 %1355, %v1353
    %v1357 = vpop.permute.xlu0 %1356
    %v1359 = vmul.f32 %v1348, %v1357
    %v1360 = vpack.c.bf16 %v1359, %v1359
    %v1361 = vld [vmem:[%s4] sm:$0xf]
    %v1362 = vld [vmem:[%s4 + $0x4] sm:$0xf]
    %v1363 = vld [vmem:[%s4 + $0x8] sm:$0xf]
    %v1364 = vld [vmem:[%s4 + $0xc] sm:$0xf]
    %v1365 = vld [vmem:[#allocation2] sm:$0x1]
    %v1367 = vlaneseq
    %v1368 = vshrl.u32 %v1367, 7
    %v1369 = vsub.s32 0, %v1368
    %v1370 = vrot.slane %v1365, %v1369
    %v1376 = vunpack.c.l.b16 %v1361
    %v1377 = vunpack.c.l.b16 %v1362
    %v1378 = vunpack.c.l.b16 %v1363
    %v1379 = vunpack.c.l.b16 %v1364
    %v1380 = vpack.c.b16 %v1377, %v1376
    %v1381 = vpack.c.b16 %v1379, %v1378
    %v1385 = vsel %vm249, %v1360, 0
    %1387 = vmatprep.subr.bf16.mxu0 0
    %1388 = vmatpush1.bf16.msra.mxu0 0
    %1389 = vmatprep.subr.bf16.mxu0 0
    %1390 = vmatpush1.bf16.msra.mxu0 0
    %1391 = vmatprep.subr.bf16.mxu0 0
    %1392 = vmatpush1.bf16.msra.mxu0 0
    %1393 = vmatprep.subr.bf16.mxu0 0
    %1394 = vmatpush1.bf16.msra.mxu0 0
    %1395 = vmatprep.subr.bf16.mxu0 0
    %1396 = vmatpush1.bf16.msra.mxu0 0
    %1397 = vmatprep.subr.bf16.mxu0 0
    %1398 = vmatpush1.bf16.msra.mxu0 0
    %1399 = vmatprep.subr.bf16.mxu0 0
    %1400 = vmatpush1.bf16.msra.mxu0 %v1381
    %1401 = vmatprep.subr.bf16.mxu0 0
    %1402 = vmatpush1.bf16.msra.mxu0 %v1380
    %1403 = vmatprep.subr.bf16.mxu0 0
    %1404 = vmatpush2.bf16.msra.mxu0 0
    %1405 = vmatprep.subr.bf16.mxu0 0
    %1406 = vmatpush2.bf16.msra.mxu0 0
    %1407 = vmatprep.subr.bf16.mxu0 0
    %1408 = vmatpush2.bf16.msra.mxu0 0
    %1409 = vmatprep.subr.bf16.mxu0 0
    %1410 = vmatpush2.bf16.msra.mxu0 0
    %1411 = vmatprep.subr.bf16.mxu0 0
    %1412 = vmatpush2.bf16.msra.mxu0 0
    %1413 = vmatprep.subr.bf16.mxu0 0
    %1414 = vmatpush2.bf16.msra.mxu0 0
    %1415 = vmatprep.subr.bf16.mxu0 0
    %1416 = vmatpush2.bf16.msra.mxu0 0
    %1417 = vmatprep.subr.bf16.mxu0 0
    %1418 = vmatpush2.bf16.msra.mxu0 0
    %1419 = vmatprep.mubr.bf16.mxu0 0
    %1420 = vmatmul.mubr.bf16.gmra.mxu0 %v1385
    %v1421 = vpop.f32.mrf.mxu0
    %v1422 = vadd.f32 %v1370, %v1421
    %v1423 = vpop.f32.mrf.mxu0
    %v1424 = vpop.f32.mrf.mxu0
    %v1425 = vpop.f32.mrf.mxu0
    %1426 = vdwg.mxu0
    %vm1427 = vcmask 1024
    %1428 = vst.msk [vmem:[%s16] sm:$0x3] %vm1427, %v1422
    // Predicated region
    $region94: #{tpu_custom_call.1} parent=1 // pred_check
      _
    $region95: #{tpu_custom_call.1} parent=1 // pred_check_branch
      %1430 = sbr.rel (0) target = $region97
    $region96: #{tpu_custom_call.1} parent=1 // pred_region
      _
    $region97: #{tpu_custom_call.1} parent=1 // pred_fallthru
      _
    // Predicated region
    $region98: #{tpu_custom_call.1} parent=1 // pred_check
      _
    $region99: #{tpu_custom_call.1} parent=1 // pred_check_branch
      %1432 = sbr.rel (0) target = $region101
    $region100: #{tpu_custom_call.1} parent=1 // pred_region
      _
    $region101: #{tpu_custom_call.1} parent=1 // pred_fallthru
      _
    %1433 = vsyncpa [#allocation4], 1
    %1434 = vsyncpa [#allocation6], 1
    %1435 = vsyncpa [#allocation9], 1
    %1436 = vsyncpa [#allocation12], 1

</llo_original>
